<compile_context>
chip_gen: v7x
topology: tpu7x:2x2x1
jax: 0.10.0
libtpu: 0.0.40
codegen_flags: <defaults>
</compile_context>

<pallas_src>
import math
import functools

import jax
import jax.numpy as jnp
import numpy as np
from jax.experimental import pallas as pl
from jax.experimental.pallas import tpu as pltpu

EPS = 1e-9  # matches `eps` in the PyTorch module
_HI = jax.lax.Precision.HIGHEST


def _graph_encoder_kernel(
    h_ref, q_ref, k_ref, v_ref, e_ref, adj_ref, sel_ref,
    we_ref, be_ref, wo_ref, bo_ref, w1_ref, b1_ref, w2_ref, b2_ref,
    g1_ref, bt1_ref, g2_ref, bt2_ref,
    out_ref,
    wv_acc, wz_acc,
    *, T, Ts, Din, D, H,
):
    HD = H * D
    j = pl.program_id(1)                      # src-tile (reduction) axis, innermost

    @pl.when(j == 0)
    def _init():
        wv_acc[...] = jnp.zeros_like(wv_acc)
        wz_acc[...] = jnp.zeros_like(wz_acc)

    q = q_ref[...]                            # [T, HD]  (already scaled by 1/sqrt(D))
    k = k_ref[...]                            # [Ts, HD]
    v = v_ref[...]                            # [Ts, HD]

    # ---- edge projection: stream this (dst, src) edge tile through MXU once
    e2 = e_ref[...].reshape(T * Ts, Din)
    eh = jnp.dot(e2, we_ref[...], preferred_element_type=jnp.float32) + be_ref[...]
    eh3 = eh.reshape(T, Ts, HD)               # [dst, src, HD]

    # ---- per-edge, per-(head,dim) products for ALL heads at once (VPU)
    tmp = eh3 * k[None, :, :] * q[:, None, :]                     # [T, Ts, HD]

    # ---- per-head D-reduce as ONE MXU matmul against a block-"ones" selector:
    # sel[c, c'] = 1 iff c and c' belong to the same head, so every lane of a
    # head carries that head's dot product (lane-dense, no per-head loop).
    dot_rep = jnp.dot(tmp.reshape(T * Ts, HD), sel_ref[...],
                      preferred_element_type=jnp.float32)         # [T*Ts, HD]
    dot3 = dot_rep.reshape(T, Ts, HD)

    # exp THEN mask -- matches the reference/DGL semantics exactly.
    score3 = jnp.exp(dot3) * adj_ref[...]                         # [T,Ts,HD]*[T,Ts,1]

    # ---- src-tile partial sums accumulated in f32 VMEM scratch
    wv_acc[...] += jnp.sum(score3 * v[None, :, :], axis=1)        # [T, HD]
    wz_acc[...] += jnp.sum(score3, axis=1)                        # [T, HD] (per head, lane-replicated)

    @pl.when(j == pl.num_programs(1) - 1)
    def _finalize():
        # wz_acc already holds each head's wZ replicated across its D lanes,
        # so the normalization is a plain elementwise multiply.
        attn = wv_acc[...] * pl.reciprocal(wz_acc[...] + EPS, approx=False)   # [T, HD]

        # output projection on the concatenated heads (single matmul)
        h0 = jnp.dot(attn, wo_ref[...], preferred_element_type=jnp.float32) + bo_ref[...]

        # norm1(h0, h) -- torch .std() is unbiased (divides by Din-1)
        c = h0 + h_ref[...]
        mean = jnp.mean(c, axis=-1, keepdims=True)
        var = jnp.sum((c - mean) ** 2, axis=-1, keepdims=True) * (1.0 / (Din - 1))
        inv_std = pl.reciprocal(jnp.sqrt(var) + EPS, approx=False)
        hn = g1_ref[...] * ((c - mean) * inv_std) + bt1_ref[...]

        # feed-forward (NO activation between the two linears, per FFLayer)
        ff = jnp.dot(hn, w1_ref[...], preferred_element_type=jnp.float32) + b1_ref[...]
        ff = jnp.dot(ff, w2_ref[...], preferred_element_type=jnp.float32) + b2_ref[...]

        # norm2(hn, ff)
        c2 = hn + ff
        mean2 = jnp.mean(c2, axis=-1, keepdims=True)
        var2 = jnp.sum((c2 - mean2) ** 2, axis=-1, keepdims=True) * (1.0 / (Din - 1))
        inv_std2 = pl.reciprocal(jnp.sqrt(var2) + EPS, approx=False)
        out_ref[...] = g2_ref[...] * ((c2 - mean2) * inv_std2) + bt2_ref[...]


def _default_vmem_limit_bytes():
    """~75% of physical VMEM per core: ~96 MiB on v5e/v6e, ~48 MiB on v7x."""
    phys = 128 * 1024 * 1024
    try:
        info = pltpu.get_tpu_info()
        phys = int(getattr(info, "vmem_capacity_bytes", phys))
    except Exception:
        pass
    return min((phys * 3) // 4, 100 * 1024 * 1024)


def _pick_tile(n, cap=128):
    if n <= cap:
        return n
    t = (cap // 8) * 8
    while t >= 8 and n % t:
        t -= 8
    return t if t >= 8 else n


def graph_encoder_layer(h, e_flat, adj, params, *, out_dim, num_head,
                        tile_dst=None, tile_src=None,
                        edge_dtype=jnp.float32, edge_buffers=None,
                        vmem_limit_bytes=None):
    """h: [N, Din] node features; e_flat: [N*N, Din] edge features with
    edge_id = dst*N + src; adj: [N, N] float mask adj[dst, src]."""
    N, Din = h.shape
    D, H = out_dim, num_head
    HD = H * D

    T = tile_dst if tile_dst is not None else _pick_tile(N)
    Ts = tile_src if tile_src is not None else _pick_tile(N)
    assert N % T == 0 and N % Ts == 0, "N must be divisible by both tile sizes"
    assert (T % 8 == 0 or T == N) and (Ts % 8 == 0 or Ts == N), "tiles must be sublane-aligned"

    h = h.astype(jnp.float32)

    # ---- hoisted projections: computed ONCE, outside the sequential grid loop
    inv_sqrt_dk = 1.0 / math.sqrt(D)
    q = (jnp.dot(h, params["wq"], precision=_HI) + params["bq"]) * inv_sqrt_dk  # [N, HD]
    k = jnp.dot(h, params["wk"], precision=_HI) + params["bk"]                  # [N, HD]
    v = jnp.dot(h, params["wv"], precision=_HI) + params["bv"]                  # [N, HD]

    e3 = e_flat.reshape(N, N, Din).astype(edge_dtype)    # [dst, src, Din] (opt-in bf16 stream)
    adj3 = adj.reshape(N, N, 1).astype(jnp.float32)      # trailing singleton keeps blocks legal

    # block-"ones" head selector: sel[c, c'] = 1 iff same head
    head_id = np.arange(HD) // D
    sel = jnp.asarray((head_id[:, None] == head_id[None, :]).astype(np.float32))

    we = params["we"].astype(edge_dtype)
    weights = [we, params["be"], params["wo"], params["bo"],
               params["w1"], params["b1"], params["w2"], params["b2"],
               params["g1"], params["bt1"], params["g2"], params["bt2"]]

    def _full(a):  # whole-array VMEM-resident spec (same block every grid step)
        nd = a.ndim
        return pl.BlockSpec(a.shape, lambda i, j, _nd=nd: (0,) * _nd)

    edge_spec_kwargs = {}
    if edge_buffers is not None and edge_buffers != 2:
        # deeper buffering for v5e/v6e if edge-slab DMA is exposed; skip on v7x
        edge_spec_kwargs["pipeline_mode"] = pl.Buffered(edge_buffers)

    in_specs = [
        pl.BlockSpec((T, Din), lambda i, j: (i, 0)),                 # h (residual, dst tile)
        pl.BlockSpec((T, HD), lambda i, j: (i, 0)),                  # q (dst tile)
        pl.BlockSpec((Ts, HD), lambda i, j: (j, 0)),                 # k (src tile)
        pl.BlockSpec((Ts, HD), lambda i, j: (j, 0)),                 # v (src tile)
        pl.BlockSpec((T, Ts, Din), lambda i, j: (i, j, 0),
                     **edge_spec_kwargs),                            # edge slab tile (pipelined)
        pl.BlockSpec((T, Ts, 1), lambda i, j: (i, j, 0)),            # adjacency tile
        pl.BlockSpec((HD, HD), lambda i, j: (0, 0)),                 # head selector (resident)
    ] + [_full(w) for w in weights]

    kernel = functools.partial(_graph_encoder_kernel, T=T, Ts=Ts, Din=Din, D=D, H=H)

    if vmem_limit_bytes is None:
        vmem_limit_bytes = _default_vmem_limit_bytes()

    return pl.pallas_call(
        kernel,
        out_shape=jax.ShapeDtypeStruct((N, Din), jnp.float32),
        grid=(N // T, N // Ts),
        in_specs=in_specs,
        out_specs=pl.BlockSpec((T, Din), lambda i, j: (i, 0)),
        scratch_shapes=[pltpu.VMEM((T, HD), jnp.float32),            # wV accumulator
                        pltpu.VMEM((T, HD), jnp.float32)],           # wZ accumulator
        compiler_params=pltpu.CompilerParams(
            # dst tiles shard across TensorCores; src axis is the reduction.
            dimension_semantics=("parallel", "arbitrary"),
            vmem_limit_bytes=int(vmem_limit_bytes),
        ),
    )(h, q, k, v, e3, adj3, sel, *weights)


def _ref_forward(h, e_flat, adj, p, *, out_dim, num_head):
    """Plain-JAX reference mirroring the PyTorch/DGL semantics."""
    N, Din = h.shape
    H, D = num_head, out_dim
    mm = lambda a, b: jnp.dot(a, b, precision=_HI)
    Qh = (mm(h, p["wq"]) + p["bq"]).reshape(N, H, D)
    Kh = (mm(h, p["wk"]) + p["bk"]).reshape(N, H, D)
    Vh = (mm(h, p["wv"]) + p["bv"]).reshape(N, H, D)
    Eh = (mm(e_flat, p["we"]) + p["be"]).reshape(N, N, H, D)     # [dst, src, H, D]
    dot = (Kh[None, :, :, :] * Qh[:, None, :, :] * Eh).sum(-1) / math.sqrt(D)
    score = jnp.exp(dot) * adj[:, :, None]                        # [dst, src, H]
    wV = jnp.einsum("dsh,shf->dhf", score, Vh, precision=_HI)     # [N, H, D]
    wZ = score.sum(1)                                             # [N, H]
    attn = wV / (wZ[..., None] + EPS)
    h0 = mm(attn.reshape(N, H * D), p["wo"]) + p["bo"]

    def norm(a, b, g, bt):
        c = a + b
        mean = c.mean(-1, keepdims=True)
        std = jnp.sqrt(((c - mean) ** 2).sum(-1, keepdims=True) / (Din - 1))
        return g * ((c - mean) / (std + EPS)) + bt

    hn = norm(h0, h, p["g1"], p["bt1"])
    ff = mm(mm(hn, p["w1"]) + p["b1"], p["w2"]) + p["b2"]
    return norm(hn, ff, p["g2"], p["bt2"])


if __name__ == "__main__":
    # Small deterministic configuration (2 x 2 grid of dst/src tiles).
    N = 16         # nodes
    in_dim = 32
    out_dim = 16
    num_head = 2
    ff_dim = 32

    key = jax.random.PRNGKey(0)
    ks = jax.random.split(key, 12)

    def linear(k, fan_in, fan_out):
        kw, kb = jax.random.split(k)
        bound = 1.0 / math.sqrt(fan_in)
        W = jax.random.uniform(kw, (fan_in, fan_out), jnp.float32, -bound, bound)
        b = jax.random.uniform(kb, (1, fan_out), jnp.float32, -bound, bound)
        return W, b

    HD = num_head * out_dim
    wq, bq = linear(ks[0], in_dim, HD)
    wk, bk = linear(ks[1], in_dim, HD)
    wv, bv = linear(ks[2], in_dim, HD)
    we, be = linear(ks[3], in_dim, HD)
    wo, bo = linear(ks[4], HD, in_dim)
    w1, b1 = linear(ks[5], in_dim, ff_dim)
    w2, b2 = linear(ks[6], ff_dim, in_dim)
    params = dict(
        wq=wq, bq=bq, wk=wk, bk=bk, wv=wv, bv=bv, we=we, be=be,
        wo=wo, bo=bo, w1=w1, b1=b1, w2=w2, b2=b2,
        g1=jnp.ones((1, in_dim), jnp.float32), bt1=jnp.zeros((1, in_dim), jnp.float32),
        g2=jnp.ones((1, in_dim), jnp.float32), bt2=jnp.zeros((1, in_dim), jnp.float32),
    )

    # Graph: random edges + guaranteed self-loops; dense edge-feature slab.
    h = jax.random.normal(ks[7], (N, in_dim), jnp.float32)
    adj_rand = (jax.random.uniform(ks[8], (N, N)) < 0.4).astype(jnp.float32)
    adj = jnp.maximum(adj_rand, jnp.eye(N, dtype=jnp.float32))       # adj[dst, src]
    e_flat = jax.random.normal(ks[9], (N * N, in_dim), jnp.float32)  # edge_id = dst*N + src

    out = graph_encoder_layer(h, e_flat, adj, params,
                              out_dim=out_dim, num_head=num_head,
                              tile_dst=8, tile_src=8)
    out = jax.block_until_ready(out)

    ref = _ref_forward(h, e_flat, adj, params, out_dim=out_dim, num_head=num_head)
    np.testing.assert_allclose(np.asarray(out), np.asarray(ref), rtol=1e-4, atol=1e-4)

    print("KERNEL_OK")
</pallas_src>

<mosaic_0001>
module attributes {stable_mosaic.version = 11 : i64} {
  func.func @_graph_encoder_kernel(%arg0: i32, %arg1: i32, %arg2: memref<8x32xf32, #tpu.memory_space<vmem>>, %arg3: memref<8x32xf32, #tpu.memory_space<vmem>>, %arg4: memref<8x32xf32, #tpu.memory_space<vmem>>, %arg5: memref<8x32xf32, #tpu.memory_space<vmem>>, %arg6: memref<8x8x32xf32, #tpu.memory_space<vmem>>, %arg7: memref<8x8x1xf32, #tpu.memory_space<vmem>>, %arg8: memref<32x32xf32, #tpu.memory_space<vmem>>, %arg9: memref<32x32xf32, #tpu.memory_space<vmem>>, %arg10: memref<1x32xf32, #tpu.memory_space<vmem>>, %arg11: memref<32x32xf32, #tpu.memory_space<vmem>>, %arg12: memref<1x32xf32, #tpu.memory_space<vmem>>, %arg13: memref<32x32xf32, #tpu.memory_space<vmem>>, %arg14: memref<1x32xf32, #tpu.memory_space<vmem>>, %arg15: memref<32x32xf32, #tpu.memory_space<vmem>>, %arg16: memref<1x32xf32, #tpu.memory_space<vmem>>, %arg17: memref<1x32xf32, #tpu.memory_space<vmem>>, %arg18: memref<1x32xf32, #tpu.memory_space<vmem>>, %arg19: memref<1x32xf32, #tpu.memory_space<vmem>>, %arg20: memref<1x32xf32, #tpu.memory_space<vmem>>, %arg21: memref<8x32xf32, #tpu.memory_space<vmem>>, %arg22: memref<8x32xf32, #tpu.memory_space<vmem>>, %arg23: memref<8x32xf32, #tpu.memory_space<vmem>>) attributes {dimension_semantics = [#tpu.dimension_semantics<parallel>, #tpu.dimension_semantics<arbitrary>], iteration_bounds = array<i64: 2, 2>, scalar_prefetch = 0 : i64, scratch_operands = 2 : i64, tpu.core_type = #tpu.core_type<tc>, window_params = [{transform_indices = @transform_0, window_bounds = array<i64: 8, 32>}, {transform_indices = @transform_1, window_bounds = array<i64: 8, 32>}, {transform_indices = @transform_2, window_bounds = array<i64: 8, 32>}, {transform_indices = @transform_3, window_bounds = array<i64: 8, 32>}, {transform_indices = @transform_4, window_bounds = array<i64: 8, 8, 32>}, {transform_indices = @transform_5, window_bounds = array<i64: 8, 8, 1>}, {pipeline_mode = #tpu.pipeline_mode<synchronous>, transform_indices = @transform_6, window_bounds = array<i64: 32, 32>}, {pipeline_mode = #tpu.pipeline_mode<synchronous>, transform_indices = @transform_7, window_bounds = array<i64: 32, 32>}, {pipeline_mode = #tpu.pipeline_mode<synchronous>, transform_indices = @transform_8, window_bounds = array<i64: 1, 32>}, {pipeline_mode = #tpu.pipeline_mode<synchronous>, transform_indices = @transform_9, window_bounds = array<i64: 32, 32>}, {pipeline_mode = #tpu.pipeline_mode<synchronous>, transform_indices = @transform_10, window_bounds = array<i64: 1, 32>}, {pipeline_mode = #tpu.pipeline_mode<synchronous>, transform_indices = @transform_11, window_bounds = array<i64: 32, 32>}, {pipeline_mode = #tpu.pipeline_mode<synchronous>, transform_indices = @transform_12, window_bounds = array<i64: 1, 32>}, {pipeline_mode = #tpu.pipeline_mode<synchronous>, transform_indices = @transform_13, window_bounds = array<i64: 32, 32>}, {pipeline_mode = #tpu.pipeline_mode<synchronous>, transform_indices = @transform_14, window_bounds = array<i64: 1, 32>}, {pipeline_mode = #tpu.pipeline_mode<synchronous>, transform_indices = @transform_15, window_bounds = array<i64: 1, 32>}, {pipeline_mode = #tpu.pipeline_mode<synchronous>, transform_indices = @transform_16, window_bounds = array<i64: 1, 32>}, {pipeline_mode = #tpu.pipeline_mode<synchronous>, transform_indices = @transform_17, window_bounds = array<i64: 1, 32>}, {pipeline_mode = #tpu.pipeline_mode<synchronous>, transform_indices = @transform_18, window_bounds = array<i64: 1, 32>}, {transform_indices = @transform_19, window_bounds = array<i64: 8, 32>}]} {
    %c0_i32 = arith.constant 0 : i32
    %0 = arith.cmpi eq, %arg1, %c0_i32 : i32
    %1 = arith.extui %0 : i1 to i32
    %c0_i32_0 = arith.constant 0 : i32
    %2 = arith.cmpi ne, %1, %c0_i32_0 : i32
    scf.if %2 {
      %cst_30 = arith.constant 0.000000e+00 : f32
      %42 = vector.broadcast %cst_30 : f32 to vector<8x32xf32>
      %c0_31 = arith.constant 0 : index
      %c0_32 = arith.constant 0 : index
      %43 = vector.load %arg22[%c0_31, %c0_32] : memref<8x32xf32, #tpu.memory_space<vmem>>, vector<8x32xf32>
      tpu.vector_store %arg22[%c0_31, %c0_32], %42 {strides = array<i32>} : memref<8x32xf32, #tpu.memory_space<vmem>>, vector<8x32xf32>,
      %cst_33 = arith.constant 0.000000e+00 : f32
      %44 = vector.broadcast %cst_33 : f32 to vector<8x32xf32>
      %c0_34 = arith.constant 0 : index
      %c0_35 = arith.constant 0 : index
      %45 = vector.load %arg23[%c0_34, %c0_35] : memref<8x32xf32, #tpu.memory_space<vmem>>, vector<8x32xf32>
      tpu.vector_store %arg23[%c0_34, %c0_35], %44 {strides = array<i32>} : memref<8x32xf32, #tpu.memory_space<vmem>>, vector<8x32xf32>,
    } else {
    }
    %c0 = arith.constant 0 : index
    %c0_1 = arith.constant 0 : index
    %3 = vector.load %arg3[%c0, %c0_1] : memref<8x32xf32, #tpu.memory_space<vmem>>, vector<8x32xf32>
    %c0_2 = arith.constant 0 : index
    %c0_3 = arith.constant 0 : index
    %4 = vector.load %arg4[%c0_2, %c0_3] : memref<8x32xf32, #tpu.memory_space<vmem>>, vector<8x32xf32>
    %c0_4 = arith.constant 0 : index
    %c0_5 = arith.constant 0 : index
    %5 = vector.load %arg5[%c0_4, %c0_5] : memref<8x32xf32, #tpu.memory_space<vmem>>, vector<8x32xf32>
    %c0_6 = arith.constant 0 : index
    %c0_7 = arith.constant 0 : index
    %c0_8 = arith.constant 0 : index
    %6 = vector.load %arg6[%c0_6, %c0_7, %c0_8] : memref<8x8x32xf32, #tpu.memory_space<vmem>>, vector<8x8x32xf32>
    %7 = vector.shape_cast %6 : vector<8x8x32xf32> to vector<64x32xf32>
    %c0_9 = arith.constant 0 : index
    %c0_10 = arith.constant 0 : index
    %8 = vector.load %arg9[%c0_9, %c0_10] : memref<32x32xf32, #tpu.memory_space<vmem>>, vector<32x32xf32>
    %cst = arith.constant dense<0.000000e+00> : vector<64x32xf32>
    %9 = tpu.matmul %7, %8, %cst {dimension_numbers = #tpu.dot_dimension_numbers<[1], [0], [0], [1], [0, 0, 1, 1], [], []>} : vector<64x32xf32>, vector<32x32xf32>, vector<64x32xf32> -> vector<64x32xf32>
    %c0_11 = arith.constant 0 : index
    %c0_12 = arith.constant 0 : index
    %10 = vector.load %arg10[%c0_11, %c0_12] : memref<1x32xf32, #tpu.memory_space<vmem>>, vector<1x32xf32>
    %11 = vector.broadcast %10 : vector<1x32xf32> to vector<64x32xf32>
    %12 = arith.addf %9, %11 : vector<64x32xf32>
    %13 = vector.shape_cast %12 : vector<64x32xf32> to vector<8x8x32xf32>
    %14 = vector.shape_cast %4 : vector<8x32xf32> to vector<1x8x32xf32>
    %15 = vector.broadcast %14 : vector<1x8x32xf32> to vector<8x8x32xf32>
    %16 = arith.mulf %13, %15 : vector<8x8x32xf32>
    %17 = vector.shape_cast %3 : vector<8x32xf32> to vector<8x1x32xf32>
    %18 = vector.broadcast %17 : vector<8x1x32xf32> to vector<8x8x32xf32>
    %19 = arith.mulf %16, %18 : vector<8x8x32xf32>
    %20 = vector.shape_cast %19 : vector<8x8x32xf32> to vector<64x32xf32>
    %c0_13 = arith.constant 0 : index
    %c0_14 = arith.constant 0 : index
    %21 = vector.load %arg8[%c0_13, %c0_14] : memref<32x32xf32, #tpu.memory_space<vmem>>, vector<32x32xf32>
    %cst_15 = arith.constant dense<0.000000e+00> : vector<64x32xf32>
    %22 = tpu.matmul %20, %21, %cst_15 {dimension_numbers = #tpu.dot_dimension_numbers<[1], [0], [0], [1], [0, 0, 1, 1], [], []>} : vector<64x32xf32>, vector<32x32xf32>, vector<64x32xf32> -> vector<64x32xf32>
    %23 = vector.shape_cast %22 : vector<64x32xf32> to vector<8x8x32xf32>
    %24 = math.exp %23 : vector<8x8x32xf32>
    %c0_16 = arith.constant 0 : index
    %c0_17 = arith.constant 0 : index
    %c0_18 = arith.constant 0 : index
    %25 = vector.load %arg7[%c0_16, %c0_17, %c0_18] : memref<8x8x1xf32, #tpu.memory_space<vmem>>, vector<8x8x1xf32>
    %26 = vector.broadcast %25 : vector<8x8x1xf32> to vector<8x8x32xf32>
    %27 = arith.mulf %24, %26 : vector<8x8x32xf32>
    %c0_19 = arith.constant 0 : index
    %c0_20 = arith.constant 0 : index
    %28 = vector.load %arg22[%c0_19, %c0_20] : memref<8x32xf32, #tpu.memory_space<vmem>>, vector<8x32xf32>
    %29 = vector.shape_cast %5 : vector<8x32xf32> to vector<1x8x32xf32>
    %30 = vector.broadcast %29 : vector<1x8x32xf32> to vector<8x8x32xf32>
    %31 = arith.mulf %27, %30 : vector<8x8x32xf32>
    %cst_21 = arith.constant dense<0.000000e+00> : vector<8x32xf32>
    %32 = vector.multi_reduction <add>, %31, %cst_21 [1] : vector<8x8x32xf32> to vector<8x32xf32>
    %33 = arith.addf %28, %32 : vector<8x32xf32>
    %c0_22 = arith.constant 0 : index
    %c0_23 = arith.constant 0 : index
    %34 = vector.load %arg22[%c0_22, %c0_23] : memref<8x32xf32, #tpu.memory_space<vmem>>, vector<8x32xf32>
    tpu.vector_store %arg22[%c0_22, %c0_23], %33 {strides = array<i32>} : memref<8x32xf32, #tpu.memory_space<vmem>>, vector<8x32xf32>,
    %c0_24 = arith.constant 0 : index
    %c0_25 = arith.constant 0 : index
    %35 = vector.load %arg23[%c0_24, %c0_25] : memref<8x32xf32, #tpu.memory_space<vmem>>, vector<8x32xf32>
    %cst_26 = arith.constant dense<0.000000e+00> : vector<8x32xf32>
    %36 = vector.multi_reduction <add>, %27, %cst_26 [1] : vector<8x8x32xf32> to vector<8x32xf32>
    %37 = arith.addf %35, %36 : vector<8x32xf32>
    %c0_27 = arith.constant 0 : index
    %c0_28 = arith.constant 0 : index
    %38 = vector.load %arg23[%c0_27, %c0_28] : memref<8x32xf32, #tpu.memory_space<vmem>>, vector<8x32xf32>
    tpu.vector_store %arg23[%c0_27, %c0_28], %37 {strides = array<i32>} : memref<8x32xf32, #tpu.memory_space<vmem>>, vector<8x32xf32>,
    %c1_i32 = arith.constant 1 : i32
    %39 = arith.cmpi eq, %arg1, %c1_i32 : i32
    %40 = arith.extui %39 : i1 to i32
    %c0_i32_29 = arith.constant 0 : i32
    %41 = arith.cmpi ne, %40, %c0_i32_29 : i32
    scf.if %41 {
      %c0_30 = arith.constant 0 : index
      %c0_31 = arith.constant 0 : index
      %42 = vector.load %arg22[%c0_30, %c0_31] : memref<8x32xf32, #tpu.memory_space<vmem>>, vector<8x32xf32>
      %c0_32 = arith.constant 0 : index
      %c0_33 = arith.constant 0 : index
      %43 = vector.load %arg23[%c0_32, %c0_33] : memref<8x32xf32, #tpu.memory_space<vmem>>, vector<8x32xf32>
      %cst_34 = arith.constant 9.99999971E-10 : f32
      %44 = vector.broadcast %cst_34 : f32 to vector<8x32xf32>
      %45 = arith.addf %43, %44 : vector<8x32xf32>
      %46 = tpu.reciprocal %45 : vector<8x32xf32> -> vector<8x32xf32>
      %47 = arith.mulf %42, %46 : vector<8x32xf32>
      %c0_35 = arith.constant 0 : index
      %c0_36 = arith.constant 0 : index
      %48 = vector.load %arg11[%c0_35, %c0_36] : memref<32x32xf32, #tpu.memory_space<vmem>>, vector<32x32xf32>
      %cst_37 = arith.constant dense<0.000000e+00> : vector<8x32xf32>
      %49 = tpu.matmul %47, %48, %cst_37 {dimension_numbers = #tpu.dot_dimension_numbers<[1], [0], [0], [1], [0, 0, 1, 1], [], []>} : vector<8x32xf32>, vector<32x32xf32>, vector<8x32xf32> -> vector<8x32xf32>
      %c0_38 = arith.constant 0 : index
      %c0_39 = arith.constant 0 : index
      %50 = vector.load %arg12[%c0_38, %c0_39] : memref<1x32xf32, #tpu.memory_space<vmem>>, vector<1x32xf32>
      %51 = vector.broadcast %50 : vector<1x32xf32> to vector<8x32xf32>
      %52 = arith.addf %49, %51 : vector<8x32xf32>
      %c0_40 = arith.constant 0 : index
      %c0_41 = arith.constant 0 : index
      %53 = vector.load %arg2[%c0_40, %c0_41] : memref<8x32xf32, #tpu.memory_space<vmem>>, vector<8x32xf32>
      %54 = arith.addf %52, %53 : vector<8x32xf32>
      %cst_42 = arith.constant dense<0.000000e+00> : vector<8xf32>
      %55 = vector.multi_reduction <add>, %54, %cst_42 [1] : vector<8x32xf32> to vector<8xf32>
      %56 = vector.shape_cast %55 : vector<8xf32> to vector<8x1xf32>
      %cst_43 = arith.constant 3.200000e+01 : f32
      %57 = vector.broadcast %cst_43 : f32 to vector<8x1xf32>
      %58 = arith.divf %56, %57 : vector<8x1xf32>
      %59 = vector.broadcast %58 : vector<8x1xf32> to vector<8x32xf32>
      %60 = arith.subf %54, %59 : vector<8x32xf32>
      %61 = arith.mulf %60, %60 : vector<8x32xf32>
      %cst_44 = arith.constant dense<0.000000e+00> : vector<8xf32>
      %62 = vector.multi_reduction <add>, %61, %cst_44 [1] : vector<8x32xf32> to vector<8xf32>
      %63 = vector.shape_cast %62 : vector<8xf32> to vector<8x1xf32>
      %cst_45 = arith.constant 0.0322580636 : f32
      %64 = vector.broadcast %cst_45 : f32 to vector<8x1xf32>
      %65 = arith.mulf %63, %64 : vector<8x1xf32>
      %66 = math.sqrt %65 : vector<8x1xf32>
      %cst_46 = arith.constant 9.99999971E-10 : f32
      %67 = vector.broadcast %cst_46 : f32 to vector<8x1xf32>
      %68 = arith.addf %66, %67 : vector<8x1xf32>
      %69 = tpu.reciprocal %68 : vector<8x1xf32> -> vector<8x1xf32>
      %c0_47 = arith.constant 0 : index
      %c0_48 = arith.constant 0 : index
      %70 = vector.load %arg17[%c0_47, %c0_48] : memref<1x32xf32, #tpu.memory_space<vmem>>, vector<1x32xf32>
      %71 = vector.broadcast %58 : vector<8x1xf32> to vector<8x32xf32>
      %72 = arith.subf %54, %71 : vector<8x32xf32>
      %73 = vector.broadcast %69 : vector<8x1xf32> to vector<8x32xf32>
      %74 = arith.mulf %72, %73 : vector<8x32xf32>
      %75 = vector.broadcast %70 : vector<1x32xf32> to vector<8x32xf32>
      %76 = arith.mulf %75, %74 : vector<8x32xf32>
      %c0_49 = arith.constant 0 : index
      %c0_50 = arith.constant 0 : index
      %77 = vector.load %arg18[%c0_49, %c0_50] : memref<1x32xf32, #tpu.memory_space<vmem>>, vector<1x32xf32>
      %78 = vector.broadcast %77 : vector<1x32xf32> to vector<8x32xf32>
      %79 = arith.addf %76, %78 : vector<8x32xf32>
      %c0_51 = arith.constant 0 : index
      %c0_52 = arith.constant 0 : index
      %80 = vector.load %arg13[%c0_51, %c0_52] : memref<32x32xf32, #tpu.memory_space<vmem>>, vector<32x32xf32>
      %cst_53 = arith.constant dense<0.000000e+00> : vector<8x32xf32>
      %81 = tpu.matmul %79, %80, %cst_53 {dimension_numbers = #tpu.dot_dimension_numbers<[1], [0], [0], [1], [0, 0, 1, 1], [], []>} : vector<8x32xf32>, vector<32x32xf32>, vector<8x32xf32> -> vector<8x32xf32>
      %c0_54 = arith.constant 0 : index
      %c0_55 = arith.constant 0 : index
      %82 = vector.load %arg14[%c0_54, %c0_55] : memref<1x32xf32, #tpu.memory_space<vmem>>, vector<1x32xf32>
      %83 = vector.broadcast %82 : vector<1x32xf32> to vector<8x32xf32>
      %84 = arith.addf %81, %83 : vector<8x32xf32>
      %c0_56 = arith.constant 0 : index
      %c0_57 = arith.constant 0 : index
      %85 = vector.load %arg15[%c0_56, %c0_57] : memref<32x32xf32, #tpu.memory_space<vmem>>, vector<32x32xf32>
      %cst_58 = arith.constant dense<0.000000e+00> : vector<8x32xf32>
      %86 = tpu.matmul %84, %85, %cst_58 {dimension_numbers = #tpu.dot_dimension_numbers<[1], [0], [0], [1], [0, 0, 1, 1], [], []>} : vector<8x32xf32>, vector<32x32xf32>, vector<8x32xf32> -> vector<8x32xf32>
      %c0_59 = arith.constant 0 : index
      %c0_60 = arith.constant 0 : index
      %87 = vector.load %arg16[%c0_59, %c0_60] : memref<1x32xf32, #tpu.memory_space<vmem>>, vector<1x32xf32>
      %88 = vector.broadcast %87 : vector<1x32xf32> to vector<8x32xf32>
      %89 = arith.addf %86, %88 : vector<8x32xf32>
      %90 = arith.addf %79, %89 : vector<8x32xf32>
      %cst_61 = arith.constant dense<0.000000e+00> : vector<8xf32>
      %91 = vector.multi_reduction <add>, %90, %cst_61 [1] : vector<8x32xf32> to vector<8xf32>
      %92 = vector.shape_cast %91 : vector<8xf32> to vector<8x1xf32>
      %cst_62 = arith.constant 3.200000e+01 : f32
      %93 = vector.broadcast %cst_62 : f32 to vector<8x1xf32>
      %94 = arith.divf %92, %93 : vector<8x1xf32>
      %95 = vector.broadcast %94 : vector<8x1xf32> to vector<8x32xf32>
      %96 = arith.subf %90, %95 : vector<8x32xf32>
      %97 = arith.mulf %96, %96 : vector<8x32xf32>
      %cst_63 = arith.constant dense<0.000000e+00> : vector<8xf32>
      %98 = vector.multi_reduction <add>, %97, %cst_63 [1] : vector<8x32xf32> to vector<8xf32>
      %99 = vector.shape_cast %98 : vector<8xf32> to vector<8x1xf32>
      %cst_64 = arith.constant 0.0322580636 : f32
      %100 = vector.broadcast %cst_64 : f32 to vector<8x1xf32>
      %101 = arith.mulf %99, %100 : vector<8x1xf32>
      %102 = math.sqrt %101 : vector<8x1xf32>
      %cst_65 = arith.constant 9.99999971E-10 : f32
      %103 = vector.broadcast %cst_65 : f32 to vector<8x1xf32>
      %104 = arith.addf %102, %103 : vector<8x1xf32>
      %105 = tpu.reciprocal %104 : vector<8x1xf32> -> vector<8x1xf32>
      %c0_66 = arith.constant 0 : index
      %c0_67 = arith.constant 0 : index
      %106 = vector.load %arg19[%c0_66, %c0_67] : memref<1x32xf32, #tpu.memory_space<vmem>>, vector<1x32xf32>
      %107 = vector.broadcast %94 : vector<8x1xf32> to vector<8x32xf32>
      %108 = arith.subf %90, %107 : vector<8x32xf32>
      %109 = vector.broadcast %105 : vector<8x1xf32> to vector<8x32xf32>
      %110 = arith.mulf %108, %109 : vector<8x32xf32>
      %111 = vector.broadcast %106 : vector<1x32xf32> to vector<8x32xf32>
      %112 = arith.mulf %111, %110 : vector<8x32xf32>
      %c0_68 = arith.constant 0 : index
      %c0_69 = arith.constant 0 : index
      %113 = vector.load %arg20[%c0_68, %c0_69] : memref<1x32xf32, #tpu.memory_space<vmem>>, vector<1x32xf32>
      %114 = vector.broadcast %113 : vector<1x32xf32> to vector<8x32xf32>
      %115 = arith.addf %112, %114 : vector<8x32xf32>
      %c0_70 = arith.constant 0 : index
      %c0_71 = arith.constant 0 : index
      %116 = vector.load %arg21[%c0_70, %c0_71] : memref<8x32xf32, #tpu.memory_space<vmem>>, vector<8x32xf32>
      tpu.vector_store %arg21[%c0_70, %c0_71], %115 {strides = array<i32>} : memref<8x32xf32, #tpu.memory_space<vmem>>, vector<8x32xf32>,
    } else {
    }
    return
  }
  func.func @transform_0(%arg0: i32, %arg1: i32) -> (i32, i32) {
    %c0_i32 = arith.constant 0 : i32
    %c0_i32_0 = arith.constant 0 : i32
    return %arg0, %c0_i32 : i32, i32
  }
  func.func @transform_1(%arg0: i32, %arg1: i32) -> (i32, i32) {
    %c0_i32 = arith.constant 0 : i32
    %c0_i32_0 = arith.constant 0 : i32
    return %arg0, %c0_i32 : i32, i32
  }
  func.func @transform_2(%arg0: i32, %arg1: i32) -> (i32, i32) {
    %c0_i32 = arith.constant 0 : i32
    %c0_i32_0 = arith.constant 0 : i32
    return %arg1, %c0_i32 : i32, i32
  }
  func.func @transform_3(%arg0: i32, %arg1: i32) -> (i32, i32) {
    %c0_i32 = arith.constant 0 : i32
    %c0_i32_0 = arith.constant 0 : i32
    return %arg1, %c0_i32 : i32, i32
  }
  func.func @transform_4(%arg0: i32, %arg1: i32) -> (i32, i32, i32) {
    %c0_i32 = arith.constant 0 : i32
    %c0_i32_0 = arith.constant 0 : i32
    return %arg0, %arg1, %c0_i32 : i32, i32, i32
  }
  func.func @transform_5(%arg0: i32, %arg1: i32) -> (i32, i32, i32) {
    %c0_i32 = arith.constant 0 : i32
    %c0_i32_0 = arith.constant 0 : i32
    return %arg0, %arg1, %c0_i32 : i32, i32, i32
  }
  func.func @transform_6(%arg0: i32, %arg1: i32) -> (i32, i32) {
    %c0_i32 = arith.constant 0 : i32
    %c0_i32_0 = arith.constant 0 : i32
    %c0_i32_1 = arith.constant 0 : i32
    return %c0_i32, %c0_i32_0 : i32, i32
  }
  func.func @transform_7(%arg0: i32, %arg1: i32) -> (i32, i32) {
    %c0_i32 = arith.constant 0 : i32
    %c0_i32_0 = arith.constant 0 : i32
    %c0_i32_1 = arith.constant 0 : i32
    return %c0_i32, %c0_i32_0 : i32, i32
  }
  func.func @transform_8(%arg0: i32, %arg1: i32) -> (i32, i32) {
    %c0_i32 = arith.constant 0 : i32
    %c0_i32_0 = arith.constant 0 : i32
    %c0_i32_1 = arith.constant 0 : i32
    return %c0_i32, %c0_i32_0 : i32, i32
  }
  func.func @transform_9(%arg0: i32, %arg1: i32) -> (i32, i32) {
    %c0_i32 = arith.constant 0 : i32
    %c0_i32_0 = arith.constant 0 : i32
    %c0_i32_1 = arith.constant 0 : i32
    return %c0_i32, %c0_i32_0 : i32, i32
  }
  func.func @transform_10(%arg0: i32, %arg1: i32) -> (i32, i32) {
    %c0_i32 = arith.constant 0 : i32
    %c0_i32_0 = arith.constant 0 : i32
    %c0_i32_1 = arith.constant 0 : i32
    return %c0_i32, %c0_i32_0 : i32, i32
  }
  func.func @transform_11(%arg0: i32, %arg1: i32) -> (i32, i32) {
    %c0_i32 = arith.constant 0 : i32
    %c0_i32_0 = arith.constant 0 : i32
    %c0_i32_1 = arith.constant 0 : i32
    return %c0_i32, %c0_i32_0 : i32, i32
  }
  func.func @transform_12(%arg0: i32, %arg1: i32) -> (i32, i32) {
    %c0_i32 = arith.constant 0 : i32
    %c0_i32_0 = arith.constant 0 : i32
    %c0_i32_1 = arith.constant 0 : i32
    return %c0_i32, %c0_i32_0 : i32, i32
  }
  func.func @transform_13(%arg0: i32, %arg1: i32) -> (i32, i32) {
    %c0_i32 = arith.constant 0 : i32
    %c0_i32_0 = arith.constant 0 : i32
    %c0_i32_1 = arith.constant 0 : i32
    return %c0_i32, %c0_i32_0 : i32, i32
  }
  func.func @transform_14(%arg0: i32, %arg1: i32) -> (i32, i32) {
    %c0_i32 = arith.constant 0 : i32
    %c0_i32_0 = arith.constant 0 : i32
    %c0_i32_1 = arith.constant 0 : i32
    return %c0_i32, %c0_i32_0 : i32, i32
  }
  func.func @transform_15(%arg0: i32, %arg1: i32) -> (i32, i32) {
    %c0_i32 = arith.constant 0 : i32
    %c0_i32_0 = arith.constant 0 : i32
    %c0_i32_1 = arith.constant 0 : i32
    return %c0_i32, %c0_i32_0 : i32, i32
  }
  func.func @transform_16(%arg0: i32, %arg1: i32) -> (i32, i32) {
    %c0_i32 = arith.constant 0 : i32
    %c0_i32_0 = arith.constant 0 : i32
    %c0_i32_1 = arith.constant 0 : i32
    return %c0_i32, %c0_i32_0 : i32, i32
  }
  func.func @transform_17(%arg0: i32, %arg1: i32) -> (i32, i32) {
    %c0_i32 = arith.constant 0 : i32
    %c0_i32_0 = arith.constant 0 : i32
    %c0_i32_1 = arith.constant 0 : i32
    return %c0_i32, %c0_i32_0 : i32, i32
  }
  func.func @transform_18(%arg0: i32, %arg1: i32) -> (i32, i32) {
    %c0_i32 = arith.constant 0 : i32
    %c0_i32_0 = arith.constant 0 : i32
    %c0_i32_1 = arith.constant 0 : i32
    return %c0_i32, %c0_i32_0 : i32, i32
  }
  func.func @transform_19(%arg0: i32, %arg1: i32) -> (i32, i32) {
    %c0_i32 = arith.constant 0 : i32
    %c0_i32_0 = arith.constant 0 : i32
    return %arg0, %c0_i32 : i32, i32
  }
}

</mosaic_0001>

<llo_original>
// kernel: tpu_custom_call.1
$region0: #{tpu_custom_call.1}
  #allocation0 [shape = 'u32[]', space=smem, size = 0x4, offset = 0x4, fixed_abs, tag = 'smem constant byte address 0x4 - core index']
  #allocation1 [shape = 'u32[144,128]{1,0:T(1,128)}', space=vmem, size = 0x12000, scoped, tag = 'internal scratch']
  #allocation2 [shape = 'f32[8,32]{1,0:T(8,128)}', space=vmem, size = 0x1000, scoped, tag = 'scratch operand']
  #allocation3 [shape = 'f32[8,32]{1,0:T(8,128)}', space=vmem, size = 0x1000, scoped, tag = 'scratch operand']
  %s0 = inlined_call_operand.hbm [shape: f32[16,32], index: 0, kind: input, shape index: {}]
  %s1 = inlined_call_operand.hbm [shape: f32[16,32], index: 1, kind: input, shape index: {}]
  %s2 = inlined_call_operand.hbm [shape: f32[16,32], index: 2, kind: input, shape index: {}]
  %s3 = inlined_call_operand.hbm [shape: f32[16,32], index: 3, kind: input, shape index: {}]
  %s4 = inlined_call_operand.hbm [shape: f32[16,16,32], index: 4, kind: input, shape index: {}]
  %s5 = inlined_call_operand.hbm [shape: f32[16,16,1], index: 5, kind: input, shape index: {}]
  %s6 = inlined_call_operand.hbm [shape: f32[32,32], index: 6, kind: input, shape index: {}]
  %s7 = inlined_call_operand.hbm [shape: f32[32,32], index: 7, kind: input, shape index: {}]
  %s8 = inlined_call_operand.hbm [shape: f32[1,32], index: 8, kind: input, shape index: {}]
  %s9 = inlined_call_operand.hbm [shape: f32[32,32], index: 9, kind: input, shape index: {}]
  %s10 = inlined_call_operand.hbm [shape: f32[1,32], index: 10, kind: input, shape index: {}]
  %s11 = inlined_call_operand.hbm [shape: f32[32,32], index: 11, kind: input, shape index: {}]
  %s12 = inlined_call_operand.hbm [shape: f32[1,32], index: 12, kind: input, shape index: {}]
  %s13 = inlined_call_operand.hbm [shape: f32[32,32], index: 13, kind: input, shape index: {}]
  %s14 = inlined_call_operand.hbm [shape: f32[1,32], index: 14, kind: input, shape index: {}]
  %s15 = inlined_call_operand.hbm [shape: f32[1,32], index: 15, kind: input, shape index: {}]
  %s16 = inlined_call_operand.hbm [shape: f32[1,32], index: 16, kind: input, shape index: {}]
  %s17 = inlined_call_operand.hbm [shape: f32[1,32], index: 17, kind: input, shape index: {}]
  %s18 = inlined_call_operand.hbm [shape: f32[1,32], index: 18, kind: input, shape index: {}]
  %s19 = inlined_call_operand.hbm [shape: f32[16,32], index: 19, kind: output, shape index: {}]
  %s20 = sld [smem:[#allocation0]]
  $region193: #{tpu_custom_call.1} parent=0
    _
  %s22 = ssub.s32 1, %s20
  %s23 = scalar_select 0, %s22, %s20
  $region1: #{tpu_custom_call.1} parent=0
    #allocation4 [shape = 'u8[8192]{0}', space=vmem, size = 0x2000, scoped, tag = 'input window, operand 0']
    #allocation5 [shape = 's32[2]{0}', space=sflag, size = 0x8, scoped, tag = 'scoped memory for tpu_custom_call.1']
    #allocation6 [shape = 's32[2]{0}', space=sflag, size = 0x8, scoped, tag = 'scoped memory for tpu_custom_call.1']
    #allocation7 [shape = 'u8[8192]{0}', space=vmem, size = 0x2000, scoped, tag = 'input window, operand 1']
    #allocation8 [shape = 's32[2]{0}', space=sflag, size = 0x8, scoped, tag = 'scoped memory for tpu_custom_call.1']
    #allocation9 [shape = 'u8[8192]{0}', space=vmem, size = 0x2000, scoped, tag = 'input window, operand 2']
    #allocation10 [shape = 'u8[8192]{0}', space=vmem, size = 0x2000, scoped, tag = 'input window, operand 3']
    #allocation11 [shape = 's32[2]{0}', space=sflag, size = 0x8, scoped, tag = 'scoped memory for tpu_custom_call.1']
    #allocation12 [shape = 'u8[65536]{0}', space=vmem, size = 0x10000, scoped, tag = 'input window, operand 4']
    #allocation13 [shape = 'u8[65536]{0}', space=vmem, size = 0x10000, scoped, tag = 'input window, operand 5']
    #allocation14 [shape = 's32[2]{0}', space=sflag, size = 0x8, scoped, tag = 'scoped memory for tpu_custom_call.1']
    #allocation15 [shape = 'u8[16384]{0}', space=vmem, size = 0x4000, scoped, tag = 'input window, operand 6, single buffered']
    #allocation16 [shape = 'u8[16384]{0}', space=vmem, size = 0x4000, scoped, tag = 'input window, operand 7, single buffered']
    #allocation17 [shape = 's32[1]{0}', space=sflag, size = 0x4, scoped, tag = 'scoped memory for tpu_custom_call.1']
    #allocation18 [shape = 'u8[512]{0}', space=vmem, size = 0x400, scoped, tag = 'input window, operand 8, single buffered']
    #allocation19 [shape = 'u8[16384]{0}', space=vmem, size = 0x4000, scoped, tag = 'input window, operand 9, single buffered']
    #allocation20 [shape = 's32[1]{0}', space=sflag, size = 0x4, scoped, tag = 'scoped memory for tpu_custom_call.1']
    #allocation21 [shape = 'u8[512]{0}', space=vmem, size = 0x400, scoped, tag = 'input window, operand 10, single buffered']
    #allocation22 [shape = 'u8[16384]{0}', space=vmem, size = 0x4000, scoped, tag = 'input window, operand 11, single buffered']
    #allocation23 [shape = 's32[1]{0}', space=sflag, size = 0x4, scoped, tag = 'scoped memory for tpu_custom_call.1']
    #allocation24 [shape = 'u8[512]{0}', space=vmem, size = 0x400, scoped, tag = 'input window, operand 12, single buffered']
    #allocation25 [shape = 'u8[16384]{0}', space=vmem, size = 0x4000, scoped, tag = 'input window, operand 13, single buffered']
    #allocation26 [shape = 's32[1]{0}', space=sflag, size = 0x4, scoped, tag = 'scoped memory for tpu_custom_call.1']
    #allocation27 [shape = 'u8[512]{0}', space=vmem, size = 0x400, scoped, tag = 'input window, operand 14, single buffered']
    #allocation28 [shape = 'u8[512]{0}', space=vmem, size = 0x400, scoped, tag = 'input window, operand 15, single buffered']
    #allocation29 [shape = 's32[1]{0}', space=sflag, size = 0x4, scoped, tag = 'scoped memory for tpu_custom_call.1']
    #allocation30 [shape = 'u8[512]{0}', space=vmem, size = 0x400, scoped, tag = 'input window, operand 16, single buffered']
    #allocation31 [shape = 'u8[512]{0}', space=vmem, size = 0x400, scoped, tag = 'input window, operand 17, single buffered']
    #allocation32 [shape = 's32[1]{0}', space=sflag, size = 0x4, scoped, tag = 'scoped memory for tpu_custom_call.1']
    #allocation33 [shape = 'u8[512]{0}', space=vmem, size = 0x400, scoped, tag = 'input window, operand 18, single buffered']
    #allocation34 [shape = 'u8[8192]{0}', space=vmem, size = 0x2000, scoped, tag = 'output window, operand 0']
    %24 = vsyncpa [#allocation5], 0
    %s25 = scalar_lea.sflag [#allocation5], 1
    %26 = vsyncpa %s25, 0
    %27 = vsyncpa [#allocation8], 0
    %s28 = scalar_lea.sflag [#allocation8], 1
    %29 = vsyncpa %s28, 0
    %30 = vsyncpa [#allocation11], 0
    %s31 = scalar_lea.sflag [#allocation11], 1
    %32 = vsyncpa %s31, 0
    %33 = vsyncpa [#allocation14], 0
    %s34 = scalar_lea.sflag [#allocation14], 1
    %35 = vsyncpa %s34, 0
    %36 = vsyncpa [#allocation17], 0
    %37 = vsyncpa [#allocation20], 0
    %38 = vsyncpa [#allocation23], 0
    %39 = vsyncpa [#allocation26], 0
    %40 = vsyncpa [#allocation29], 0
    %41 = vsyncpa [#allocation32], 0
    %42 = vsyncpa [#allocation6], 0
    %s43 = scalar_lea.sflag [#allocation6], 1
    %44 = vsyncpa %s43, 0
    loop: start=0, step=1, limit=6
    $region2: #{tpu_custom_call.1} parent=1 // loop_pre_header
      _
    $region3: #{tpu_custom_call.1} parent=1 // loop_header
      %s46 = sphi 0, %s50
      %p47 = scmp.ge.s32.totalorder %s46, 6
      %s53 = sphi 0, %s65
      %s54 = sphi 0, %s61
      %s55 = sphi 0, %s53
      %s56 = sphi 0, %s54
      %s57 = sphi 0, %s55
      %s58 = sphi 0, %s56
      %s68 = sphi 0, %s70
      %s71 = sphi 0, %s68
      %s72 = sphi 0, %s71
      %s88 = sphi 0, %s72
      %s94 = sphi 0, %s96
      %s97 = sphi 0, %s94
      %s98 = sphi 0, %s97
      %s114 = sphi 0, %s98
      %s120 = sphi 0, %s122
      %s123 = sphi 0, %s120
      %s124 = sphi 0, %s123
      %s140 = sphi 0, %s124
      %s146 = sphi 0, %s148
      %s149 = sphi 0, %s146
      %s150 = sphi 0, %s149
      %s166 = sphi 0, %s150
      %s174 = sphi 0, %s176
      %s177 = sphi 0, %s174
      %s178 = sphi 0, %s177
      %s194 = sphi 0, %s178
      %s202 = sphi 0, %s204
      %s205 = sphi 0, %s202
      %s206 = sphi 0, %s205
      %s222 = sphi 0, %s206
      %s226 = sphi 0, %s226
      %s228 = sphi 0, %s226
      %s229 = sphi 0, %s228
      %s243 = sphi 0, %s229
      %s247 = sphi 0, %s247
      %s249 = sphi 0, %s247
      %s250 = sphi 0, %s249
      %s264 = sphi 0, %s250
      %s268 = sphi 0, %s268
      %s270 = sphi 0, %s268
      %s271 = sphi 0, %s270
      %s285 = sphi 0, %s271
      %s289 = sphi 0, %s289
      %s291 = sphi 0, %s289
      %s292 = sphi 0, %s291
      %s306 = sphi 0, %s292
      %s310 = sphi 0, %s310
      %s312 = sphi 0, %s310
      %s313 = sphi 0, %s312
      %s327 = sphi 0, %s313
      %s331 = sphi 0, %s331
      %s333 = sphi 0, %s331
      %s334 = sphi 0, %s333
      %s348 = sphi 0, %s334
      %s352 = sphi 0, %s352
      %s354 = sphi 0, %s352
      %s355 = sphi 0, %s354
      %s369 = sphi 0, %s355
      %s373 = sphi 0, %s373
      %s375 = sphi 0, %s373
      %s376 = sphi 0, %s375
      %s390 = sphi 0, %s376
      %s394 = sphi 0, %s394
      %s396 = sphi 0, %s394
      %s397 = sphi 0, %s396
      %s411 = sphi 0, %s397
      %s415 = sphi 0, %s415
      %s417 = sphi 0, %s415
      %s418 = sphi 0, %s417
      %s432 = sphi 0, %s418
      %s436 = sphi 0, %s436
      %s438 = sphi 0, %s436
      %s439 = sphi 0, %s438
      %s453 = sphi 0, %s439
      %s457 = sphi 0, %s457
      %s459 = sphi 0, %s457
      %s460 = sphi 0, %s459
      %s474 = sphi 0, %s460
      %s478 = sphi 0, %s478
      %s480 = sphi 0, %s478
      %s481 = sphi 0, %s480
      %s495 = sphi 0, %s481
      %s501 = sphi 0, %s503
      %s504 = sphi 0, %s501
      %s505 = sphi 0, %s504
      %s521 = sphi 0, %s505
    $region4: #{tpu_custom_call.1} parent=1 // loop_header_branch
      %49 = sbr.rel (%p47) target = $region8
    $region5: #{tpu_custom_call.1} parent=1 // loop_body
      %s51 = ssub.s32 %s46, 1
      %s52 = ssub.s32 %s46, 2
      %s59 = sadd.s32 1, %s54
      %p60 = scmp.ge.s32.totalorder %s59, 2
      %s61 = scalar_select %p60, 0, %s59
      %s62 = sadd.s32 1, %s53
      %s63 = scalar_select %p60, %s62, %s53
      %p64 = scmp.ge.s32.totalorder %s63, 2
      %s65 = scalar_select %p64, 0, %s63
      %s66 = ssub.s32 %s53, %s65
      %p67 = scmp.eq.s32.totalorder %s66, 0
      %s69 = sadd.s32 %s68, 1
      %s70 = scalar_select %p67, %s68, %s69
      %p73 = pneg %p67
      %p74 = scmp.eq.s32.totalorder %s46, 3
      %p75 = por %p73, %p74
      %p76 = scmp.ne.s32.totalorder %s68, %s71
      %p77 = scmp.eq.s32.totalorder %s46, 0
      %p78 = por %p76, %p77
      %p79 = scmp.ne.s32.totalorder %s68, %s71
      %p80 = scmp.eq.s32.totalorder %s51, 3
      %p81 = por %p79, %p80
      %p82 = scmp.ne.s32.totalorder %s71, %s72
      %p83 = scmp.eq.s32.totalorder %s51, 0
      %p84 = por %p82, %p83
      %p85 = scmp.ne.s32.totalorder %s71, %s72
      %p86 = scmp.eq.s32.totalorder %s52, 3
      %p87 = por %p85, %p86
      %p89 = scmp.ne.s32.totalorder %s72, %s88
      %p90 = scmp.eq.s32.totalorder %s52, 0
      %p91 = por %p89, %p90
      %s92 = ssub.s32 %s53, %s65
      %p93 = scmp.eq.s32.totalorder %s92, 0
      %s95 = sadd.s32 %s94, 1
      %s96 = scalar_select %p93, %s94, %s95
      %p99 = pneg %p93
      %p100 = scmp.eq.s32.totalorder %s46, 3
      %p101 = por %p99, %p100
      %p102 = scmp.ne.s32.totalorder %s94, %s97
      %p103 = scmp.eq.s32.totalorder %s46, 0
      %p104 = por %p102, %p103
      %p105 = scmp.ne.s32.totalorder %s94, %s97
      %p106 = scmp.eq.s32.totalorder %s51, 3
      %p107 = por %p105, %p106
      %p108 = scmp.ne.s32.totalorder %s97, %s98
      %p109 = scmp.eq.s32.totalorder %s51, 0
      %p110 = por %p108, %p109
      %p111 = scmp.ne.s32.totalorder %s97, %s98
      %p112 = scmp.eq.s32.totalorder %s52, 3
      %p113 = por %p111, %p112
      %p115 = scmp.ne.s32.totalorder %s98, %s114
      %p116 = scmp.eq.s32.totalorder %s52, 0
      %p117 = por %p115, %p116
      %s118 = ssub.s32 %s54, %s61
      %p119 = scmp.eq.s32.totalorder %s118, 0
      %s121 = sadd.s32 %s120, 1
      %s122 = scalar_select %p119, %s120, %s121
      %p125 = pneg %p119
      %p126 = scmp.eq.s32.totalorder %s46, 3
      %p127 = por %p125, %p126
      %p128 = scmp.ne.s32.totalorder %s120, %s123
      %p129 = scmp.eq.s32.totalorder %s46, 0
      %p130 = por %p128, %p129
      %p131 = scmp.ne.s32.totalorder %s120, %s123
      %p132 = scmp.eq.s32.totalorder %s51, 3
      %p133 = por %p131, %p132
      %p134 = scmp.ne.s32.totalorder %s123, %s124
      %p135 = scmp.eq.s32.totalorder %s51, 0
      %p136 = por %p134, %p135
      %p137 = scmp.ne.s32.totalorder %s123, %s124
      %p138 = scmp.eq.s32.totalorder %s52, 3
      %p139 = por %p137, %p138
      %p141 = scmp.ne.s32.totalorder %s124, %s140
      %p142 = scmp.eq.s32.totalorder %s52, 0
      %p143 = por %p141, %p142
      %s144 = ssub.s32 %s54, %s61
      %p145 = scmp.eq.s32.totalorder %s144, 0
      %s147 = sadd.s32 %s146, 1
      %s148 = scalar_select %p145, %s146, %s147
      %p151 = pneg %p145
      %p152 = scmp.eq.s32.totalorder %s46, 3
      %p153 = por %p151, %p152
      %p154 = scmp.ne.s32.totalorder %s146, %s149
      %p155 = scmp.eq.s32.totalorder %s46, 0
      %p156 = por %p154, %p155
      %p157 = scmp.ne.s32.totalorder %s146, %s149
      %p158 = scmp.eq.s32.totalorder %s51, 3
      %p159 = por %p157, %p158
      %p160 = scmp.ne.s32.totalorder %s149, %s150
      %p161 = scmp.eq.s32.totalorder %s51, 0
      %p162 = por %p160, %p161
      %p163 = scmp.ne.s32.totalorder %s149, %s150
      %p164 = scmp.eq.s32.totalorder %s52, 3
      %p165 = por %p163, %p164
      %p167 = scmp.ne.s32.totalorder %s150, %s166
      %p168 = scmp.eq.s32.totalorder %s52, 0
      %p169 = por %p167, %p168
      %s170 = ssub.s32 %s53, %s65
      %s171 = ssub.s32 %s54, %s61
      %s172 = sor.u32 %s170, %s171
      %p173 = scmp.eq.s32.totalorder %s172, 0
      %s175 = sadd.s32 %s174, 1
      %s176 = scalar_select %p173, %s174, %s175
      %p179 = pneg %p173
      %p180 = scmp.eq.s32.totalorder %s46, 3
      %p181 = por %p179, %p180
      %p182 = scmp.ne.s32.totalorder %s174, %s177
      %p183 = scmp.eq.s32.totalorder %s46, 0
      %p184 = por %p182, %p183
      %p185 = scmp.ne.s32.totalorder %s174, %s177
      %p186 = scmp.eq.s32.totalorder %s51, 3
      %p187 = por %p185, %p186
      %p188 = scmp.ne.s32.totalorder %s177, %s178
      %p189 = scmp.eq.s32.totalorder %s51, 0
      %p190 = por %p188, %p189
      %p191 = scmp.ne.s32.totalorder %s177, %s178
      %p192 = scmp.eq.s32.totalorder %s52, 3
      %p193 = por %p191, %p192
      %p195 = scmp.ne.s32.totalorder %s178, %s194
      %p196 = scmp.eq.s32.totalorder %s52, 0
      %p197 = por %p195, %p196
      %s198 = ssub.s32 %s53, %s65
      %s199 = ssub.s32 %s54, %s61
      %s200 = sor.u32 %s198, %s199
      %p201 = scmp.eq.s32.totalorder %s200, 0
      %s203 = sadd.s32 %s202, 1
      %s204 = scalar_select %p201, %s202, %s203
      %p207 = pneg %p201
      %p208 = scmp.eq.s32.totalorder %s46, 3
      %p209 = por %p207, %p208
      %p210 = scmp.ne.s32.totalorder %s202, %s205
      %p211 = scmp.eq.s32.totalorder %s46, 0
      %p212 = por %p210, %p211
      %p213 = scmp.ne.s32.totalorder %s202, %s205
      %p214 = scmp.eq.s32.totalorder %s51, 3
      %p215 = por %p213, %p214
      %p216 = scmp.ne.s32.totalorder %s205, %s206
      %p217 = scmp.eq.s32.totalorder %s51, 0
      %p218 = por %p216, %p217
      %p219 = scmp.ne.s32.totalorder %s205, %s206
      %p220 = scmp.eq.s32.totalorder %s52, 3
      %p221 = por %p219, %p220
      %p223 = scmp.ne.s32.totalorder %s206, %s222
      %p224 = scmp.eq.s32.totalorder %s52, 0
      %p225 = por %p223, %p224
      %s227 = sadd.s32 %s226, 1
      %p230 = scmp.eq.s32.totalorder %s46, 3
      %p231 = scmp.ne.s32.totalorder %s226, %s228
      %p232 = scmp.eq.s32.totalorder %s46, 0
      %p233 = por %p231, %p232
      %p234 = scmp.ne.s32.totalorder %s226, %s228
      %p235 = scmp.eq.s32.totalorder %s51, 3
      %p236 = por %p234, %p235
      %p237 = scmp.ne.s32.totalorder %s228, %s229
      %p238 = scmp.eq.s32.totalorder %s51, 0
      %p239 = por %p237, %p238
      %p240 = scmp.ne.s32.totalorder %s228, %s229
      %p241 = scmp.eq.s32.totalorder %s52, 3
      %p242 = por %p240, %p241
      %p244 = scmp.ne.s32.totalorder %s229, %s243
      %p245 = scmp.eq.s32.totalorder %s52, 0
      %p246 = por %p244, %p245
      %s248 = sadd.s32 %s247, 1
      %p251 = scmp.eq.s32.totalorder %s46, 3
      %p252 = scmp.ne.s32.totalorder %s247, %s249
      %p253 = scmp.eq.s32.totalorder %s46, 0
      %p254 = por %p252, %p253
      %p255 = scmp.ne.s32.totalorder %s247, %s249
      %p256 = scmp.eq.s32.totalorder %s51, 3
      %p257 = por %p255, %p256
      %p258 = scmp.ne.s32.totalorder %s249, %s250
      %p259 = scmp.eq.s32.totalorder %s51, 0
      %p260 = por %p258, %p259
      %p261 = scmp.ne.s32.totalorder %s249, %s250
      %p262 = scmp.eq.s32.totalorder %s52, 3
      %p263 = por %p261, %p262
      %p265 = scmp.ne.s32.totalorder %s250, %s264
      %p266 = scmp.eq.s32.totalorder %s52, 0
      %p267 = por %p265, %p266
      %s269 = sadd.s32 %s268, 1
      %p272 = scmp.eq.s32.totalorder %s46, 3
      %p273 = scmp.ne.s32.totalorder %s268, %s270
      %p274 = scmp.eq.s32.totalorder %s46, 0
      %p275 = por %p273, %p274
      %p276 = scmp.ne.s32.totalorder %s268, %s270
      %p277 = scmp.eq.s32.totalorder %s51, 3
      %p278 = por %p276, %p277
      %p279 = scmp.ne.s32.totalorder %s270, %s271
      %p280 = scmp.eq.s32.totalorder %s51, 0
      %p281 = por %p279, %p280
      %p282 = scmp.ne.s32.totalorder %s270, %s271
      %p283 = scmp.eq.s32.totalorder %s52, 3
      %p284 = por %p282, %p283
      %p286 = scmp.ne.s32.totalorder %s271, %s285
      %p287 = scmp.eq.s32.totalorder %s52, 0
      %p288 = por %p286, %p287
      %s290 = sadd.s32 %s289, 1
      %p293 = scmp.eq.s32.totalorder %s46, 3
      %p294 = scmp.ne.s32.totalorder %s289, %s291
      %p295 = scmp.eq.s32.totalorder %s46, 0
      %p296 = por %p294, %p295
      %p297 = scmp.ne.s32.totalorder %s289, %s291
      %p298 = scmp.eq.s32.totalorder %s51, 3
      %p299 = por %p297, %p298
      %p300 = scmp.ne.s32.totalorder %s291, %s292
      %p301 = scmp.eq.s32.totalorder %s51, 0
      %p302 = por %p300, %p301
      %p303 = scmp.ne.s32.totalorder %s291, %s292
      %p304 = scmp.eq.s32.totalorder %s52, 3
      %p305 = por %p303, %p304
      %p307 = scmp.ne.s32.totalorder %s292, %s306
      %p308 = scmp.eq.s32.totalorder %s52, 0
      %p309 = por %p307, %p308
      %s311 = sadd.s32 %s310, 1
      %p314 = scmp.eq.s32.totalorder %s46, 3
      %p315 = scmp.ne.s32.totalorder %s310, %s312
      %p316 = scmp.eq.s32.totalorder %s46, 0
      %p317 = por %p315, %p316
      %p318 = scmp.ne.s32.totalorder %s310, %s312
      %p319 = scmp.eq.s32.totalorder %s51, 3
      %p320 = por %p318, %p319
      %p321 = scmp.ne.s32.totalorder %s312, %s313
      %p322 = scmp.eq.s32.totalorder %s51, 0
      %p323 = por %p321, %p322
      %p324 = scmp.ne.s32.totalorder %s312, %s313
      %p325 = scmp.eq.s32.totalorder %s52, 3
      %p326 = por %p324, %p325
      %p328 = scmp.ne.s32.totalorder %s313, %s327
      %p329 = scmp.eq.s32.totalorder %s52, 0
      %p330 = por %p328, %p329
      %s332 = sadd.s32 %s331, 1
      %p335 = scmp.eq.s32.totalorder %s46, 3
      %p336 = scmp.ne.s32.totalorder %s331, %s333
      %p337 = scmp.eq.s32.totalorder %s46, 0
      %p338 = por %p336, %p337
      %p339 = scmp.ne.s32.totalorder %s331, %s333
      %p340 = scmp.eq.s32.totalorder %s51, 3
      %p341 = por %p339, %p340
      %p342 = scmp.ne.s32.totalorder %s333, %s334
      %p343 = scmp.eq.s32.totalorder %s51, 0
      %p344 = por %p342, %p343
      %p345 = scmp.ne.s32.totalorder %s333, %s334
      %p346 = scmp.eq.s32.totalorder %s52, 3
      %p347 = por %p345, %p346
      %p349 = scmp.ne.s32.totalorder %s334, %s348
      %p350 = scmp.eq.s32.totalorder %s52, 0
      %p351 = por %p349, %p350
      %s353 = sadd.s32 %s352, 1
      %p356 = scmp.eq.s32.totalorder %s46, 3
      %p357 = scmp.ne.s32.totalorder %s352, %s354
      %p358 = scmp.eq.s32.totalorder %s46, 0
      %p359 = por %p357, %p358
      %p360 = scmp.ne.s32.totalorder %s352, %s354
      %p361 = scmp.eq.s32.totalorder %s51, 3
      %p362 = por %p360, %p361
      %p363 = scmp.ne.s32.totalorder %s354, %s355
      %p364 = scmp.eq.s32.totalorder %s51, 0
      %p365 = por %p363, %p364
      %p366 = scmp.ne.s32.totalorder %s354, %s355
      %p367 = scmp.eq.s32.totalorder %s52, 3
      %p368 = por %p366, %p367
      %p370 = scmp.ne.s32.totalorder %s355, %s369
      %p371 = scmp.eq.s32.totalorder %s52, 0
      %p372 = por %p370, %p371
      %s374 = sadd.s32 %s373, 1
      %p377 = scmp.eq.s32.totalorder %s46, 3
      %p378 = scmp.ne.s32.totalorder %s373, %s375
      %p379 = scmp.eq.s32.totalorder %s46, 0
      %p380 = por %p378, %p379
      %p381 = scmp.ne.s32.totalorder %s373, %s375
      %p382 = scmp.eq.s32.totalorder %s51, 3
      %p383 = por %p381, %p382
      %p384 = scmp.ne.s32.totalorder %s375, %s376
      %p385 = scmp.eq.s32.totalorder %s51, 0
      %p386 = por %p384, %p385
      %p387 = scmp.ne.s32.totalorder %s375, %s376
      %p388 = scmp.eq.s32.totalorder %s52, 3
      %p389 = por %p387, %p388
      %p391 = scmp.ne.s32.totalorder %s376, %s390
      %p392 = scmp.eq.s32.totalorder %s52, 0
      %p393 = por %p391, %p392
      %s395 = sadd.s32 %s394, 1
      %p398 = scmp.eq.s32.totalorder %s46, 3
      %p399 = scmp.ne.s32.totalorder %s394, %s396
      %p400 = scmp.eq.s32.totalorder %s46, 0
      %p401 = por %p399, %p400
      %p402 = scmp.ne.s32.totalorder %s394, %s396
      %p403 = scmp.eq.s32.totalorder %s51, 3
      %p404 = por %p402, %p403
      %p405 = scmp.ne.s32.totalorder %s396, %s397
      %p406 = scmp.eq.s32.totalorder %s51, 0
      %p407 = por %p405, %p406
      %p408 = scmp.ne.s32.totalorder %s396, %s397
      %p409 = scmp.eq.s32.totalorder %s52, 3
      %p410 = por %p408, %p409
      %p412 = scmp.ne.s32.totalorder %s397, %s411
      %p413 = scmp.eq.s32.totalorder %s52, 0
      %p414 = por %p412, %p413
      %s416 = sadd.s32 %s415, 1
      %p419 = scmp.eq.s32.totalorder %s46, 3
      %p420 = scmp.ne.s32.totalorder %s415, %s417
      %p421 = scmp.eq.s32.totalorder %s46, 0
      %p422 = por %p420, %p421
      %p423 = scmp.ne.s32.totalorder %s415, %s417
      %p424 = scmp.eq.s32.totalorder %s51, 3
      %p425 = por %p423, %p424
      %p426 = scmp.ne.s32.totalorder %s417, %s418
      %p427 = scmp.eq.s32.totalorder %s51, 0
      %p428 = por %p426, %p427
      %p429 = scmp.ne.s32.totalorder %s417, %s418
      %p430 = scmp.eq.s32.totalorder %s52, 3
      %p431 = por %p429, %p430
      %p433 = scmp.ne.s32.totalorder %s418, %s432
      %p434 = scmp.eq.s32.totalorder %s52, 0
      %p435 = por %p433, %p434
      %s437 = sadd.s32 %s436, 1
      %p440 = scmp.eq.s32.totalorder %s46, 3
      %p441 = scmp.ne.s32.totalorder %s436, %s438
      %p442 = scmp.eq.s32.totalorder %s46, 0
      %p443 = por %p441, %p442
      %p444 = scmp.ne.s32.totalorder %s436, %s438
      %p445 = scmp.eq.s32.totalorder %s51, 3
      %p446 = por %p444, %p445
      %p447 = scmp.ne.s32.totalorder %s438, %s439
      %p448 = scmp.eq.s32.totalorder %s51, 0
      %p449 = por %p447, %p448
      %p450 = scmp.ne.s32.totalorder %s438, %s439
      %p451 = scmp.eq.s32.totalorder %s52, 3
      %p452 = por %p450, %p451
      %p454 = scmp.ne.s32.totalorder %s439, %s453
      %p455 = scmp.eq.s32.totalorder %s52, 0
      %p456 = por %p454, %p455
      %s458 = sadd.s32 %s457, 1
      %p461 = scmp.eq.s32.totalorder %s46, 3
      %p462 = scmp.ne.s32.totalorder %s457, %s459
      %p463 = scmp.eq.s32.totalorder %s46, 0
      %p464 = por %p462, %p463
      %p465 = scmp.ne.s32.totalorder %s457, %s459
      %p466 = scmp.eq.s32.totalorder %s51, 3
      %p467 = por %p465, %p466
      %p468 = scmp.ne.s32.totalorder %s459, %s460
      %p469 = scmp.eq.s32.totalorder %s51, 0
      %p470 = por %p468, %p469
      %p471 = scmp.ne.s32.totalorder %s459, %s460
      %p472 = scmp.eq.s32.totalorder %s52, 3
      %p473 = por %p471, %p472
      %p475 = scmp.ne.s32.totalorder %s460, %s474
      %p476 = scmp.eq.s32.totalorder %s52, 0
      %p477 = por %p475, %p476
      %s479 = sadd.s32 %s478, 1
      %p482 = scmp.eq.s32.totalorder %s46, 3
      %p483 = scmp.ne.s32.totalorder %s478, %s480
      %p484 = scmp.eq.s32.totalorder %s46, 0
      %p485 = por %p483, %p484
      %p486 = scmp.ne.s32.totalorder %s478, %s480
      %p487 = scmp.eq.s32.totalorder %s51, 3
      %p488 = por %p486, %p487
      %p489 = scmp.ne.s32.totalorder %s480, %s481
      %p490 = scmp.eq.s32.totalorder %s51, 0
      %p491 = por %p489, %p490
      %p492 = scmp.ne.s32.totalorder %s480, %s481
      %p493 = scmp.eq.s32.totalorder %s52, 3
      %p494 = por %p492, %p493
      %p496 = scmp.ne.s32.totalorder %s481, %s495
      %p497 = scmp.eq.s32.totalorder %s52, 0
      %p498 = por %p496, %p497
      %s499 = ssub.s32 %s53, %s65
      %p500 = scmp.eq.s32.totalorder %s499, 0
      %s502 = sadd.s32 %s501, 1
      %s503 = scalar_select %p500, %s501, %s502
      %p506 = pneg %p500
      %p507 = scmp.eq.s32.totalorder %s46, 3
      %p508 = por %p506, %p507
      %p509 = scmp.ne.s32.totalorder %s501, %s504
      %p510 = scmp.eq.s32.totalorder %s46, 0
      %p511 = por %p509, %p510
      %p512 = scmp.ne.s32.totalorder %s501, %s504
      %p513 = scmp.eq.s32.totalorder %s51, 3
      %p514 = por %p512, %p513
      %p515 = scmp.ne.s32.totalorder %s504, %s505
      %p516 = scmp.eq.s32.totalorder %s51, 0
      %p517 = por %p515, %p516
      %p518 = scmp.ne.s32.totalorder %s504, %s505
      %p519 = scmp.eq.s32.totalorder %s52, 3
      %p520 = por %p518, %p519
      %p522 = scmp.ne.s32.totalorder %s505, %s521
      %p523 = scmp.eq.s32.totalorder %s52, 0
      %p524 = por %p522, %p523
      %p525 = scmp.le.s32.totalorder 1, %s46
      %p526 = scmp.lt.s32.totalorder %s46, 5
      %p527 = pnand %p525, %p526
      %p528 = pneg %p527
      // Predicated region
      $region9: #{tpu_custom_call.1} parent=5 // pred_check
        _
      $region10: #{tpu_custom_call.1} parent=5 // pred_check_branch
        %530 = sbr.rel (%p527) target = $region12
      $region11: #{tpu_custom_call.1} parent=5 // pred_region
        %s531 = ssub.s32 %s46, 1
        // Predicated region
        $region13: #{tpu_custom_call.1} parent=11 // pred_check
          %p532 = pneg %p239
        $region14: #{tpu_custom_call.1} parent=11 // pred_check_branch
          %534 = sbr.rel (%p532) target = $region16
        $region15: #{tpu_custom_call.1} parent=11 // pred_region
          %s536 = ssub.s32 512, 512
          %537 = vsyncadd [#allocation14], %s536
          %s538 = sshll.u32 [#allocation15], 4
          %s539 = int_to_ptr.vmem [resolvable:$true] %s538
          %544 = dma.hbm_to_vmem [thread:$0]  %s6, 512, %s539, [#allocation14], 128, 128, 8
        $region16: #{tpu_custom_call.1} parent=11 // pred_fallthru
          _
        // Predicated region
        $region17: #{tpu_custom_call.1} parent=11 // pred_check
          %p545 = pneg %p260
        $region18: #{tpu_custom_call.1} parent=11 // pred_check_branch
          %547 = sbr.rel (%p545) target = $region20
        $region19: #{tpu_custom_call.1} parent=11 // pred_region
          %s549 = ssub.s32 512, 512
          %550 = vsyncadd [#allocation17], %s549
          %s551 = sshll.u32 [#allocation16], 4
          %s552 = int_to_ptr.vmem [resolvable:$true] %s551
          %557 = dma.hbm_to_vmem [thread:$0]  %s7, 512, %s552, [#allocation17], 128, 128, 8
        $region20: #{tpu_custom_call.1} parent=11 // pred_fallthru
          _
        // Predicated region
        $region21: #{tpu_custom_call.1} parent=11 // pred_check
          %p558 = pneg %p281
        $region22: #{tpu_custom_call.1} parent=11 // pred_check_branch
          %560 = sbr.rel (%p558) target = $region24
        $region23: #{tpu_custom_call.1} parent=11 // pred_region
          %s562 = ssub.s32 16, 16
          %563 = vsyncadd [#allocation17], %s562
          %s565 = sshll.u32 [#allocation18], 4
          %s566 = int_to_ptr.vmem [resolvable:$true] %s565
          %568 = dma.hbm_to_vmem [thread:$0]  %s8, 16, %s566, [#allocation17]
        $region24: #{tpu_custom_call.1} parent=11 // pred_fallthru
          _
        // Predicated region
        $region25: #{tpu_custom_call.1} parent=11 // pred_check
          %p569 = pneg %p302
        $region26: #{tpu_custom_call.1} parent=11 // pred_check_branch
          %571 = sbr.rel (%p569) target = $region28
        $region27: #{tpu_custom_call.1} parent=11 // pred_region
          %s573 = ssub.s32 512, 512
          %574 = vsyncadd [#allocation20], %s573
          %s575 = sshll.u32 [#allocation19], 4
          %s576 = int_to_ptr.vmem [resolvable:$true] %s575
          %581 = dma.hbm_to_vmem [thread:$0]  %s9, 512, %s576, [#allocation20], 128, 128, 8
        $region28: #{tpu_custom_call.1} parent=11 // pred_fallthru
          _
        // Predicated region
        $region29: #{tpu_custom_call.1} parent=11 // pred_check
          %p582 = pneg %p323
        $region30: #{tpu_custom_call.1} parent=11 // pred_check_branch
          %584 = sbr.rel (%p582) target = $region32
        $region31: #{tpu_custom_call.1} parent=11 // pred_region
          %s586 = ssub.s32 16, 16
          %587 = vsyncadd [#allocation20], %s586
          %s589 = sshll.u32 [#allocation21], 4
          %s590 = int_to_ptr.vmem [resolvable:$true] %s589
          %592 = dma.hbm_to_vmem [thread:$0]  %s10, 16, %s590, [#allocation20]
        $region32: #{tpu_custom_call.1} parent=11 // pred_fallthru
          _
        // Predicated region
        $region33: #{tpu_custom_call.1} parent=11 // pred_check
          %p593 = pneg %p344
        $region34: #{tpu_custom_call.1} parent=11 // pred_check_branch
          %595 = sbr.rel (%p593) target = $region36
        $region35: #{tpu_custom_call.1} parent=11 // pred_region
          %s597 = ssub.s32 512, 512
          %598 = vsyncadd [#allocation23], %s597
          %s599 = sshll.u32 [#allocation22], 4
          %s600 = int_to_ptr.vmem [resolvable:$true] %s599
          %605 = dma.hbm_to_vmem [thread:$0]  %s11, 512, %s600, [#allocation23], 128, 128, 8
        $region36: #{tpu_custom_call.1} parent=11 // pred_fallthru
          _
        // Predicated region
        $region37: #{tpu_custom_call.1} parent=11 // pred_check
          %p606 = pneg %p365
        $region38: #{tpu_custom_call.1} parent=11 // pred_check_branch
          %608 = sbr.rel (%p606) target = $region40
        $region39: #{tpu_custom_call.1} parent=11 // pred_region
          %s610 = ssub.s32 16, 16
          %611 = vsyncadd [#allocation23], %s610
          %s613 = sshll.u32 [#allocation24], 4
          %s614 = int_to_ptr.vmem [resolvable:$true] %s613
          %616 = dma.hbm_to_vmem [thread:$0]  %s12, 16, %s614, [#allocation23]
        $region40: #{tpu_custom_call.1} parent=11 // pred_fallthru
          _
        // Predicated region
        $region41: #{tpu_custom_call.1} parent=11 // pred_check
          %p617 = pneg %p386
        $region42: #{tpu_custom_call.1} parent=11 // pred_check_branch
          %619 = sbr.rel (%p617) target = $region44
        $region43: #{tpu_custom_call.1} parent=11 // pred_region
          %s621 = ssub.s32 512, 512
          %622 = vsyncadd [#allocation26], %s621
          %s623 = sshll.u32 [#allocation25], 4
          %s624 = int_to_ptr.vmem [resolvable:$true] %s623
          %629 = dma.hbm_to_vmem [thread:$0]  %s13, 512, %s624, [#allocation26], 128, 128, 8
        $region44: #{tpu_custom_call.1} parent=11 // pred_fallthru
          _
        // Predicated region
        $region45: #{tpu_custom_call.1} parent=11 // pred_check
          %p630 = pneg %p407
        $region46: #{tpu_custom_call.1} parent=11 // pred_check_branch
          %632 = sbr.rel (%p630) target = $region48
        $region47: #{tpu_custom_call.1} parent=11 // pred_region
          %s634 = ssub.s32 16, 16
          %635 = vsyncadd [#allocation26], %s634
          %s637 = sshll.u32 [#allocation27], 4
          %s638 = int_to_ptr.vmem [resolvable:$true] %s637
          %640 = dma.hbm_to_vmem [thread:$0]  %s14, 16, %s638, [#allocation26]
        $region48: #{tpu_custom_call.1} parent=11 // pred_fallthru
          _
        // Predicated region
        $region49: #{tpu_custom_call.1} parent=11 // pred_check
          %p641 = pneg %p428
        $region50: #{tpu_custom_call.1} parent=11 // pred_check_branch
          %643 = sbr.rel (%p641) target = $region52
        $region51: #{tpu_custom_call.1} parent=11 // pred_region
          %s645 = ssub.s32 16, 16
          %646 = vsyncadd [#allocation29], %s645
          %s648 = sshll.u32 [#allocation28], 4
          %s649 = int_to_ptr.vmem [resolvable:$true] %s648
          %651 = dma.hbm_to_vmem [thread:$0]  %s15, 16, %s649, [#allocation29]
        $region52: #{tpu_custom_call.1} parent=11 // pred_fallthru
          _
        // Predicated region
        $region53: #{tpu_custom_call.1} parent=11 // pred_check
          %p652 = pneg %p449
        $region54: #{tpu_custom_call.1} parent=11 // pred_check_branch
          %654 = sbr.rel (%p652) target = $region56
        $region55: #{tpu_custom_call.1} parent=11 // pred_region
          %s656 = ssub.s32 16, 16
          %657 = vsyncadd [#allocation29], %s656
          %s659 = sshll.u32 [#allocation30], 4
          %s660 = int_to_ptr.vmem [resolvable:$true] %s659
          %662 = dma.hbm_to_vmem [thread:$0]  %s16, 16, %s660, [#allocation29]
        $region56: #{tpu_custom_call.1} parent=11 // pred_fallthru
          _
        // Predicated region
        $region57: #{tpu_custom_call.1} parent=11 // pred_check
          %p663 = pneg %p470
        $region58: #{tpu_custom_call.1} parent=11 // pred_check_branch
          %665 = sbr.rel (%p663) target = $region60
        $region59: #{tpu_custom_call.1} parent=11 // pred_region
          %s667 = ssub.s32 16, 16
          %668 = vsyncadd [#allocation32], %s667
          %s670 = sshll.u32 [#allocation31], 4
          %s671 = int_to_ptr.vmem [resolvable:$true] %s670
          %673 = dma.hbm_to_vmem [thread:$0]  %s17, 16, %s671, [#allocation32]
        $region60: #{tpu_custom_call.1} parent=11 // pred_fallthru
          _
        // Predicated region
        $region61: #{tpu_custom_call.1} parent=11 // pred_check
          %p674 = pneg %p491
        $region62: #{tpu_custom_call.1} parent=11 // pred_check_branch
          %676 = sbr.rel (%p674) target = $region64
        $region63: #{tpu_custom_call.1} parent=11 // pred_region
          %s678 = ssub.s32 16, 16
          %679 = vsyncadd [#allocation32], %s678
          %s681 = sshll.u32 [#allocation33], 4
          %s682 = int_to_ptr.vmem [resolvable:$true] %s681
          %684 = dma.hbm_to_vmem [thread:$0]  %s18, 16, %s682, [#allocation32]
        $region64: #{tpu_custom_call.1} parent=11 // pred_fallthru
          _
      $region12: #{tpu_custom_call.1} parent=5 // pred_fallthru
        _
      %p685 = scmp.lt.s32.totalorder %s46, 4
      // Predicated region
      $region65: #{tpu_custom_call.1} parent=5 // pred_check
        %p686 = pneg %p685
      $region66: #{tpu_custom_call.1} parent=5 // pred_check_branch
        %688 = sbr.rel (%p686) target = $region68
      $region67: #{tpu_custom_call.1} parent=5 // pred_region
        // Predicated region
        $region69: #{tpu_custom_call.1} parent=67 // pred_check
          %p689 = pneg %p78
        $region70: #{tpu_custom_call.1} parent=67 // pred_check_branch
          %691 = sbr.rel (%p689) target = $region72
        $region71: #{tpu_custom_call.1} parent=67 // pred_region
          %s692 = sand.u32 %s68, 1
          %s693 = scalar_lea.sflag [#allocation5], %s692
          %s694 = sand.u32 %s68, 1
          %s695 = smul.addr %s694, 8
          %s696 = scalar_lea.vmem [#allocation4], %s695
          %s698 = ssub.s32 128, 128
          %699 = vsyncadd %s693, %s698
          %s700 = smul.addr %s53, 128
          %s701 = scalar_lea.hbm %s0, %s700
          %s703 = sshll.u32 %s696, 4
          %s704 = int_to_ptr.vmem [resolvable:$true] %s703
          %706 = dma.hbm_to_vmem [thread:$0]  %s701, 128, %s704, %s693
        $region72: #{tpu_custom_call.1} parent=67 // pred_fallthru
          _
        // Predicated region
        $region73: #{tpu_custom_call.1} parent=67 // pred_check
          %p707 = pneg %p104
        $region74: #{tpu_custom_call.1} parent=67 // pred_check_branch
          %709 = sbr.rel (%p707) target = $region76
        $region75: #{tpu_custom_call.1} parent=67 // pred_region
          %s710 = sand.u32 %s46, 1
          %s711 = scalar_lea.sflag [#allocation8], %s710
          %s712 = sand.u32 %s94, 1
          %s713 = smul.addr %s712, 8
          %s714 = scalar_lea.vmem [#allocation7], %s713
          %s716 = ssub.s32 128, 128
          %717 = vsyncadd %s711, %s716
          %s718 = smul.addr %s53, 128
          %s719 = scalar_lea.hbm %s1, %s718
          %s721 = sshll.u32 %s714, 4
          %s722 = int_to_ptr.vmem [resolvable:$true] %s721
          %724 = dma.hbm_to_vmem [thread:$0]  %s719, 128, %s722, %s711
        $region76: #{tpu_custom_call.1} parent=67 // pred_fallthru
          _
        // Predicated region
        $region77: #{tpu_custom_call.1} parent=67 // pred_check
          %p725 = pneg %p130
        $region78: #{tpu_custom_call.1} parent=67 // pred_check_branch
          %727 = sbr.rel (%p725) target = $region80
        $region79: #{tpu_custom_call.1} parent=67 // pred_region
          %s728 = sand.u32 %s46, 1
          %s729 = scalar_lea.sflag [#allocation8], %s728
          %s730 = sand.u32 %s120, 1
          %s731 = smul.addr %s730, 8
          %s732 = scalar_lea.vmem [#allocation9], %s731
          %s734 = ssub.s32 128, 128
          %735 = vsyncadd %s729, %s734
          %s736 = smul.addr %s54, 128
          %s737 = scalar_lea.hbm %s2, %s736
          %s739 = sshll.u32 %s732, 4
          %s740 = int_to_ptr.vmem [resolvable:$true] %s739
          %742 = dma.hbm_to_vmem [thread:$0]  %s737, 128, %s740, %s729
        $region80: #{tpu_custom_call.1} parent=67 // pred_fallthru
          _
        // Predicated region
        $region81: #{tpu_custom_call.1} parent=67 // pred_check
          %p743 = pneg %p156
        $region82: #{tpu_custom_call.1} parent=67 // pred_check_branch
          %745 = sbr.rel (%p743) target = $region84
        $region83: #{tpu_custom_call.1} parent=67 // pred_region
          %s746 = sand.u32 %s46, 1
          %s747 = scalar_lea.sflag [#allocation11], %s746
          %s748 = sand.u32 %s146, 1
          %s749 = smul.addr %s748, 8
          %s750 = scalar_lea.vmem [#allocation10], %s749
          %s752 = ssub.s32 128, 128
          %753 = vsyncadd %s747, %s752
          %s754 = smul.addr %s54, 128
          %s755 = scalar_lea.hbm %s3, %s754
          %s757 = sshll.u32 %s750, 4
          %s758 = int_to_ptr.vmem [resolvable:$true] %s757
          %760 = dma.hbm_to_vmem [thread:$0]  %s755, 128, %s758, %s747
        $region84: #{tpu_custom_call.1} parent=67 // pred_fallthru
          _
        // Predicated region
        $region85: #{tpu_custom_call.1} parent=67 // pred_check
          %p761 = pneg %p184
        $region86: #{tpu_custom_call.1} parent=67 // pred_check_branch
          %763 = sbr.rel (%p761) target = $region88
        $region87: #{tpu_custom_call.1} parent=67 // pred_region
          %s764 = sand.u32 %s46, 1
          %s765 = scalar_lea.sflag [#allocation11], %s764
          %s766 = sand.u32 %s174, 1
          %s767 = smul.addr %s766, 64
          %s768 = scalar_lea.vmem [#allocation12], %s767
          %s769 = smul.u32 8, %s53
          %s771 = ssub.s32 1024, 1024
          %772 = vsyncadd %s765, %s771
          %s773 = smul.addr %s769, 2
          %s774 = sadd.s32 %s54, %s773
          %s775 = smul.addr %s774, 128
          %s776 = scalar_lea.hbm %s4, %s775
          %s777 = sshll.u32 %s768, 4
          %s778 = int_to_ptr.vmem [resolvable:$true] %s777
          %783 = dma.hbm_to_vmem [thread:$0]  %s776, 1024, %s778, %s765, 256, 128, 8
        $region88: #{tpu_custom_call.1} parent=67 // pred_fallthru
          _
        // Predicated region
        $region89: #{tpu_custom_call.1} parent=67 // pred_check
          %p784 = pneg %p212
        $region90: #{tpu_custom_call.1} parent=67 // pred_check_branch
          %786 = sbr.rel (%p784) target = $region92
        $region91: #{tpu_custom_call.1} parent=67 // pred_region
          %s787 = sand.u32 %s46, 1
          %s788 = scalar_lea.sflag [#allocation14], %s787
          %s789 = sand.u32 %s202, 1
          %s790 = smul.addr %s789, 64
          %s791 = scalar_lea.vmem [#allocation13], %s790
          %s792 = smul.u32 8, %s53
          %s794 = ssub.s32 1024, 1024
          %795 = vsyncadd %s788, %s794
          %s796 = smul.addr %s792, 2
          %s797 = sadd.s32 %s54, %s796
          %s798 = smul.addr %s797, 128
          %s799 = scalar_lea.hbm %s5, %s798
          %s800 = sshll.u32 %s791, 4
          %s801 = int_to_ptr.vmem [resolvable:$true] %s800
          %806 = dma.hbm_to_vmem [thread:$0]  %s799, 1024, %s801, %s788, 256, 128, 8
        $region92: #{tpu_custom_call.1} parent=67 // pred_fallthru
          _
      $region68: #{tpu_custom_call.1} parent=5 // pred_fallthru
        _
      %p807 = scmp.le.s32.totalorder 1, %s46
      %p808 = scmp.lt.s32.totalorder %s46, 5
      %p809 = pnand %p807, %p808
      %p810 = pneg %p809
      // Predicated region
      $region93: #{tpu_custom_call.1} parent=5 // pred_check
        _
      $region94: #{tpu_custom_call.1} parent=5 // pred_check_branch
        %812 = sbr.rel (%p809) target = $region96
      $region95: #{tpu_custom_call.1} parent=5 // pred_region
        %s813 = ssub.s32 %s46, 1
        %s814 = sand.u32 %s71, 1
        %s815 = scalar_lea.sflag [#allocation5], %s814
        %s816 = sand.u32 %s71, 1
        %s817 = smul.addr %s816, 8
        %s818 = scalar_lea.vmem [#allocation4], %s817
        // Predicated region
        $region97: #{tpu_custom_call.1} parent=95 // pred_check
          %p819 = pneg %p84
        $region98: #{tpu_custom_call.1} parent=95 // pred_check_branch
          %821 = sbr.rel (%p819) target = $region100
        $region99: #{tpu_custom_call.1} parent=95 // pred_region
          %822 = dma.done %s815, 128
        $region100: #{tpu_custom_call.1} parent=95 // pred_fallthru
          _
        %s823 = sand.u32 %s51, 1
        %s824 = scalar_lea.sflag [#allocation8], %s823
        %s825 = sand.u32 %s97, 1
        %s826 = smul.addr %s825, 8
        %s827 = scalar_lea.vmem [#allocation7], %s826
        // Predicated region
        $region101: #{tpu_custom_call.1} parent=95 // pred_check
          %p828 = pneg %p110
        $region102: #{tpu_custom_call.1} parent=95 // pred_check_branch
          %830 = sbr.rel (%p828) target = $region104
        $region103: #{tpu_custom_call.1} parent=95 // pred_region
          %831 = dma.done %s824, 128
        $region104: #{tpu_custom_call.1} parent=95 // pred_fallthru
          _
        %s832 = sand.u32 %s51, 1
        %s833 = scalar_lea.sflag [#allocation8], %s832
        %s834 = sand.u32 %s123, 1
        %s835 = smul.addr %s834, 8
        %s836 = scalar_lea.vmem [#allocation9], %s835
        // Predicated region
        $region105: #{tpu_custom_call.1} parent=95 // pred_check
          %p837 = pneg %p136
        $region106: #{tpu_custom_call.1} parent=95 // pred_check_branch
          %839 = sbr.rel (%p837) target = $region108
        $region107: #{tpu_custom_call.1} parent=95 // pred_region
          %840 = dma.done %s833, 128
        $region108: #{tpu_custom_call.1} parent=95 // pred_fallthru
          _
        %s841 = sand.u32 %s51, 1
        %s842 = scalar_lea.sflag [#allocation11], %s841
        %s843 = sand.u32 %s149, 1
        %s844 = smul.addr %s843, 8
        %s845 = scalar_lea.vmem [#allocation10], %s844
        // Predicated region
        $region109: #{tpu_custom_call.1} parent=95 // pred_check
          %p846 = pneg %p162
        $region110: #{tpu_custom_call.1} parent=95 // pred_check_branch
          %848 = sbr.rel (%p846) target = $region112
        $region111: #{tpu_custom_call.1} parent=95 // pred_region
          %849 = dma.done %s842, 128
        $region112: #{tpu_custom_call.1} parent=95 // pred_fallthru
          _
        %s850 = sand.u32 %s51, 1
        %s851 = scalar_lea.sflag [#allocation11], %s850
        %s852 = sand.u32 %s177, 1
        %s853 = smul.addr %s852, 64
        %s854 = scalar_lea.vmem [#allocation12], %s853
        // Predicated region
        $region113: #{tpu_custom_call.1} parent=95 // pred_check
          %p855 = pneg %p190
        $region114: #{tpu_custom_call.1} parent=95 // pred_check_branch
          %857 = sbr.rel (%p855) target = $region116
        $region115: #{tpu_custom_call.1} parent=95 // pred_region
          %858 = dma.done %s851, 1024
        $region116: #{tpu_custom_call.1} parent=95 // pred_fallthru
          _
        %s859 = sand.u32 %s51, 1
        %s860 = scalar_lea.sflag [#allocation14], %s859
        %s861 = sand.u32 %s205, 1
        %s862 = smul.addr %s861, 64
        %s863 = scalar_lea.vmem [#allocation13], %s862
        // Predicated region
        $region117: #{tpu_custom_call.1} parent=95 // pred_check
          %p864 = pneg %p218
        $region118: #{tpu_custom_call.1} parent=95 // pred_check_branch
          %866 = sbr.rel (%p864) target = $region120
        $region119: #{tpu_custom_call.1} parent=95 // pred_region
          %867 = dma.done %s860, 1024
        $region120: #{tpu_custom_call.1} parent=95 // pred_fallthru
          _
        // Predicated region
        $region121: #{tpu_custom_call.1} parent=95 // pred_check
          %p868 = pneg %p239
        $region122: #{tpu_custom_call.1} parent=95 // pred_check_branch
          %870 = sbr.rel (%p868) target = $region124
        $region123: #{tpu_custom_call.1} parent=95 // pred_region
          %871 = dma.done [#allocation14], 512
        $region124: #{tpu_custom_call.1} parent=95 // pred_fallthru
          _
        // Predicated region
        $region125: #{tpu_custom_call.1} parent=95 // pred_check
          %p872 = pneg %p260
        $region126: #{tpu_custom_call.1} parent=95 // pred_check_branch
          %874 = sbr.rel (%p872) target = $region128
        $region127: #{tpu_custom_call.1} parent=95 // pred_region
          %875 = dma.done [#allocation17], 512
        $region128: #{tpu_custom_call.1} parent=95 // pred_fallthru
          _
        // Predicated region
        $region129: #{tpu_custom_call.1} parent=95 // pred_check
          %p876 = pneg %p281
        $region130: #{tpu_custom_call.1} parent=95 // pred_check_branch
          %878 = sbr.rel (%p876) target = $region132
        $region131: #{tpu_custom_call.1} parent=95 // pred_region
          %879 = dma.done [#allocation17], 16
        $region132: #{tpu_custom_call.1} parent=95 // pred_fallthru
          _
        // Predicated region
        $region133: #{tpu_custom_call.1} parent=95 // pred_check
          %p880 = pneg %p302
        $region134: #{tpu_custom_call.1} parent=95 // pred_check_branch
          %882 = sbr.rel (%p880) target = $region136
        $region135: #{tpu_custom_call.1} parent=95 // pred_region
          %883 = dma.done [#allocation20], 512
        $region136: #{tpu_custom_call.1} parent=95 // pred_fallthru
          _
        // Predicated region
        $region137: #{tpu_custom_call.1} parent=95 // pred_check
          %p884 = pneg %p323
        $region138: #{tpu_custom_call.1} parent=95 // pred_check_branch
          %886 = sbr.rel (%p884) target = $region140
        $region139: #{tpu_custom_call.1} parent=95 // pred_region
          %887 = dma.done [#allocation20], 16
        $region140: #{tpu_custom_call.1} parent=95 // pred_fallthru
          _
        // Predicated region
        $region141: #{tpu_custom_call.1} parent=95 // pred_check
          %p888 = pneg %p344
        $region142: #{tpu_custom_call.1} parent=95 // pred_check_branch
          %890 = sbr.rel (%p888) target = $region144
        $region143: #{tpu_custom_call.1} parent=95 // pred_region
          %891 = dma.done [#allocation23], 512
        $region144: #{tpu_custom_call.1} parent=95 // pred_fallthru
          _
        // Predicated region
        $region145: #{tpu_custom_call.1} parent=95 // pred_check
          %p892 = pneg %p365
        $region146: #{tpu_custom_call.1} parent=95 // pred_check_branch
          %894 = sbr.rel (%p892) target = $region148
        $region147: #{tpu_custom_call.1} parent=95 // pred_region
          %895 = dma.done [#allocation23], 16
        $region148: #{tpu_custom_call.1} parent=95 // pred_fallthru
          _
        // Predicated region
        $region149: #{tpu_custom_call.1} parent=95 // pred_check
          %p896 = pneg %p386
        $region150: #{tpu_custom_call.1} parent=95 // pred_check_branch
          %898 = sbr.rel (%p896) target = $region152
        $region151: #{tpu_custom_call.1} parent=95 // pred_region
          %899 = dma.done [#allocation26], 512
        $region152: #{tpu_custom_call.1} parent=95 // pred_fallthru
          _
        // Predicated region
        $region153: #{tpu_custom_call.1} parent=95 // pred_check
          %p900 = pneg %p407
        $region154: #{tpu_custom_call.1} parent=95 // pred_check_branch
          %902 = sbr.rel (%p900) target = $region156
        $region155: #{tpu_custom_call.1} parent=95 // pred_region
          %903 = dma.done [#allocation26], 16
        $region156: #{tpu_custom_call.1} parent=95 // pred_fallthru
          _
        // Predicated region
        $region157: #{tpu_custom_call.1} parent=95 // pred_check
          %p904 = pneg %p428
        $region158: #{tpu_custom_call.1} parent=95 // pred_check_branch
          %906 = sbr.rel (%p904) target = $region160
        $region159: #{tpu_custom_call.1} parent=95 // pred_region
          %907 = dma.done [#allocation29], 16
        $region160: #{tpu_custom_call.1} parent=95 // pred_fallthru
          _
        // Predicated region
        $region161: #{tpu_custom_call.1} parent=95 // pred_check
          %p908 = pneg %p449
        $region162: #{tpu_custom_call.1} parent=95 // pred_check_branch
          %910 = sbr.rel (%p908) target = $region164
        $region163: #{tpu_custom_call.1} parent=95 // pred_region
          %911 = dma.done [#allocation29], 16
        $region164: #{tpu_custom_call.1} parent=95 // pred_fallthru
          _
        // Predicated region
        $region165: #{tpu_custom_call.1} parent=95 // pred_check
          %p912 = pneg %p470
        $region166: #{tpu_custom_call.1} parent=95 // pred_check_branch
          %914 = sbr.rel (%p912) target = $region168
        $region167: #{tpu_custom_call.1} parent=95 // pred_region
          %915 = dma.done [#allocation32], 16
        $region168: #{tpu_custom_call.1} parent=95 // pred_fallthru
          _
        // Predicated region
        $region169: #{tpu_custom_call.1} parent=95 // pred_check
          %p916 = pneg %p491
        $region170: #{tpu_custom_call.1} parent=95 // pred_check_branch
          %918 = sbr.rel (%p916) target = $region172
        $region171: #{tpu_custom_call.1} parent=95 // pred_region
          %919 = dma.done [#allocation32], 16
        $region172: #{tpu_custom_call.1} parent=95 // pred_fallthru
          _
        %s920 = sand.u32 %s71, 1
        %s921 = scalar_lea.sflag [#allocation5], %s920
        %s922 = sand.u32 %s71, 1
        %s923 = smul.addr %s922, 8
        %s924 = scalar_lea.vmem [#allocation4], %s923
        %p925 = pneg %p84
        %p926 = pneg %p81
        %s927 = sand.u32 %s51, 1
        %s928 = scalar_lea.sflag [#allocation8], %s927
        %s929 = sand.u32 %s97, 1
        %s930 = smul.addr %s929, 8
        %s931 = scalar_lea.vmem [#allocation7], %s930
        %p932 = pneg %p110
        %p933 = pneg %p107
        %s934 = sand.u32 %s51, 1
        %s935 = scalar_lea.sflag [#allocation8], %s934
        %s936 = sand.u32 %s123, 1
        %s937 = smul.addr %s936, 8
        %s938 = scalar_lea.vmem [#allocation9], %s937
        %p939 = pneg %p136
        %p940 = pneg %p133
        %s941 = sand.u32 %s51, 1
        %s942 = scalar_lea.sflag [#allocation11], %s941
        %s943 = sand.u32 %s149, 1
        %s944 = smul.addr %s943, 8
        %s945 = scalar_lea.vmem [#allocation10], %s944
        %p946 = pneg %p162
        %p947 = pneg %p159
        %s948 = sand.u32 %s51, 1
        %s949 = scalar_lea.sflag [#allocation11], %s948
        %s950 = sand.u32 %s177, 1
        %s951 = smul.addr %s950, 64
        %s952 = scalar_lea.vmem [#allocation12], %s951
        %p953 = pneg %p190
        %p954 = pneg %p187
        %s955 = sand.u32 %s51, 1
        %s956 = scalar_lea.sflag [#allocation14], %s955
        %s957 = sand.u32 %s205, 1
        %s958 = smul.addr %s957, 64
        %s959 = scalar_lea.vmem [#allocation13], %s958
        %p960 = pneg %p218
        %p961 = pneg %p215
        %p962 = pneg %p239
        %p963 = pneg %p236
        %p964 = pneg %p260
        %p965 = pneg %p257
        %p966 = pneg %p281
        %p967 = pneg %p278
        %p968 = pneg %p302
        %p969 = pneg %p299
        %p970 = pneg %p323
        %p971 = pneg %p320
        %p972 = pneg %p344
        %p973 = pneg %p341
        %p974 = pneg %p365
        %p975 = pneg %p362
        %p976 = pneg %p386
        %p977 = pneg %p383
        %p978 = pneg %p407
        %p979 = pneg %p404
        %p980 = pneg %p428
        %p981 = pneg %p425
        %p982 = pneg %p449
        %p983 = pneg %p446
        %p984 = pneg %p470
        %p985 = pneg %p467
        %p986 = pneg %p491
        %p987 = pneg %p488
        %p988 = pneg %p517
        %p989 = pneg %p514
        %s990 = sand.u32 %s504, 1
        %s991 = scalar_lea.sflag [#allocation6], %s990
        %s992 = sand.u32 %s504, 1
        %s993 = smul.addr %s992, 8
        %s994 = scalar_lea.vmem [#allocation34], %s993
        %s995 = smul.u32 8, %s55
        %s996 = smul.u32 8, %s55
        %p997 = scmp.eq.s32.totalorder %s56, 0
        // Predicated region
        $region173: #{tpu_custom_call.1} parent=95 // pred_check
          %p998 = pneg %p997
        $region174: #{tpu_custom_call.1} parent=95 // pred_check_branch
          %1000 = sbr.rel (%p998) target = $region176
        $region175: #{tpu_custom_call.1} parent=95 // pred_region
          %vm1001 = vcmask 261120
          %1002 = vst.msk [vmem:[#allocation2] sm:$0xff] %vm1001, 0.0
          %1003 = vst.msk [vmem:[#allocation3] sm:$0xff] %vm1001, 0.0
        $region176: #{tpu_custom_call.1} parent=95 // pred_fallthru
          _
        %v1004 = vld [vmem:[%s827] sm:$0xff]
        %v1005 = vld [vmem:[%s836] sm:$0xff]
        %v1006 = vld [vmem:[%s845] sm:$0xff]
        %v1007 = vld [vmem:[%s854] sm:$0xff]
        %v1008 = vld [vmem:[%s854 + $0x8] sm:$0xff]
        %v1009 = vld [vmem:[%s854 + $0x10] sm:$0xff]
        %v1010 = vld [vmem:[%s854 + $0x18] sm:$0xff]
        %v1011 = vld [vmem:[%s854 + $0x20] sm:$0xff]
        %v1012 = vld [vmem:[%s854 + $0x28] sm:$0xff]
        %v1013 = vld [vmem:[%s854 + $0x30] sm:$0xff]
        %v1014 = vld [vmem:[%s854 + $0x38] sm:$0xff]
        %v1015 = vld [vmem:[#allocation16] sm:$0xff]
        %v1016 = vld [vmem:[#allocation16 + $0x8] sm:$0xff]
        %v1017 = vld [vmem:[#allocation16 + $0x10] sm:$0xff]
        %v1018 = vld [vmem:[#allocation16 + $0x18] sm:$0xff]
        %v1019 = vld [vmem:[#allocation18] sm:$0x1]
        %v1021 = vlaneseq
        %v1022 = vshrl.u32 %v1021, 7
        %v1023 = vsub.s32 0, %v1022
        %v1024 = vrot.slane %v1019, %v1023
        %vm1026 = vcmask 261120
        %v1028 = vsel %vm1026, %v1007, 0
        %v1031 = vsel %vm1026, %v1008, 0
        %v1034 = vsel %vm1026, %v1009, 0
        %v1037 = vsel %vm1026, %v1010, 0
        %v1040 = vsel %vm1026, %v1011, 0
        %v1043 = vsel %vm1026, %v1012, 0
        %v1046 = vsel %vm1026, %v1013, 0
        %v1049 = vsel %vm1026, %v1014, 0
        %1051 = vmatprep.subr.mxu0 0.0
        %1052 = vmatpush1.msra.mxu0 %v1015
        %1053 = vmatprep.subr.mxu0 0.0
        %1054 = vmatpush1.msra.mxu0 %v1016
        %1055 = vmatprep.subr.mxu0 0.0
        %1056 = vmatpush1.msra.mxu0 %v1017
        %1057 = vmatprep.subr.mxu0 0.0
        %1058 = vmatpush1.msra.mxu0 %v1018
        %1059 = vmatprep.subr.mxu0 0.0
        %1060 = vmatpush1.msra.mxu0 0.0
        %1061 = vmatprep.subr.mxu0 0.0
        %1062 = vmatpush1.msra.mxu0 0.0
        %1063 = vmatprep.subr.mxu0 0.0
        %1064 = vmatpush1.msra.mxu0 0.0
        %1065 = vmatprep.subr.mxu0 0.0
        %1066 = vmatpush1.msra.mxu0 0.0
        %1067 = vmatprep.subr.mxu0 0.0
        %1068 = vmatpush1.msra.mxu0 0.0
        %1069 = vmatprep.subr.mxu0 0.0
        %1070 = vmatpush1.msra.mxu0 0.0
        %1071 = vmatprep.subr.mxu0 0.0
        %1072 = vmatpush1.msra.mxu0 0.0
        %1073 = vmatprep.subr.mxu0 0.0
        %1074 = vmatpush1.msra.mxu0 0.0
        %1075 = vmatprep.subr.mxu0 0.0
        %1076 = vmatpush1.msra.mxu0 0.0
        %1077 = vmatprep.subr.mxu0 0.0
        %1078 = vmatpush1.msra.mxu0 0.0
        %1079 = vmatprep.subr.mxu0 0.0
        %1080 = vmatpush1.msra.mxu0 0.0
        %1081 = vmatprep.subr.mxu0 0.0
        %1082 = vmatpush1.msra.mxu0 0.0
        %1083 = vmatprep.subr.mxu0 0.0
        %1084 = vmatpush1.msra.mxu0 0.0
        %1085 = vmatprep.subr.mxu0 0.0
        %1086 = vmatpush1.msra.mxu0 0.0
        %1087 = vmatprep.subr.mxu0 0.0
        %1088 = vmatpush1.msra.mxu0 0.0
        %1089 = vmatprep.subr.mxu0 0.0
        %1090 = vmatpush1.msra.mxu0 0.0
        %1091 = vmatprep.subr.mxu0 0.0
        %1092 = vmatpush1.msra.mxu0 0.0
        %1093 = vmatprep.subr.mxu0 0.0
        %1094 = vmatpush1.msra.mxu0 0.0
        %1095 = vmatprep.subr.mxu0 0.0
        %1096 = vmatpush1.msra.mxu0 0.0
        %1097 = vmatprep.subr.mxu0 0.0
        %1098 = vmatpush1.msra.mxu0 0.0
        %1099 = vmatprep.subr.mxu0 0.0
        %1100 = vmatpush1.msra.mxu0 0.0
        %1101 = vmatprep.subr.mxu0 0.0
        %1102 = vmatpush1.msra.mxu0 0.0
        %1103 = vmatprep.subr.mxu0 0.0
        %1104 = vmatpush1.msra.mxu0 0.0
        %1105 = vmatprep.subr.mxu0 0.0
        %1106 = vmatpush1.msra.mxu0 0.0
        %1107 = vmatprep.subr.mxu0 0.0
        %1108 = vmatpush1.msra.mxu0 0.0
        %1109 = vmatprep.subr.mxu0 0.0
        %1110 = vmatpush1.msra.mxu0 0.0
        %1111 = vmatprep.subr.mxu0 0.0
        %1112 = vmatpush1.msra.mxu0 0.0
        %1113 = vmatprep.subr.mxu0 0.0
        %1114 = vmatpush1.msra.mxu0 0.0
        %1115 = vmatprep.mubr.f32.mxu0 0.0
        %1116 = vmatmul.mubr.f32.gmra.mrb[0].mxu0 %v1028
        %v1117 = vpop.f32.mrb[0].mxu0
        %v1118 = vadd.f32 %v1024, %v1117
        %v1119 = vpop.f32.mrb[0].mxu0
        %1120 = vmatprep.mubr.f32.mxu0 0.0
        %1121 = vmatmul.mubr.f32.gmra.mrb[0].mxu0 %v1031
        %v1122 = vpop.f32.mrb[0].mxu0
        %v1123 = vadd.f32 %v1024, %v1122
        %v1124 = vpop.f32.mrb[0].mxu0
        %1125 = vmatprep.mubr.f32.mxu0 0.0
        %1126 = vmatmul.mubr.f32.gmra.mrb[0].mxu0 %v1034
        %v1127 = vpop.f32.mrb[0].mxu0
        %v1128 = vadd.f32 %v1024, %v1127
        %v1129 = vpop.f32.mrb[0].mxu0
        %1130 = vmatprep.mubr.f32.mxu0 0.0
        %1131 = vmatmul.mubr.f32.gmra.mrb[0].mxu0 %v1037
        %v1132 = vpop.f32.mrb[0].mxu0
        %v1133 = vadd.f32 %v1024, %v1132
        %v1134 = vpop.f32.mrb[0].mxu0
        %1135 = vmatprep.mubr.f32.mxu0 0.0
        %1136 = vmatmul.mubr.f32.gmra.mrb[0].mxu0 %v1040
        %v1137 = vpop.f32.mrb[0].mxu0
        %v1138 = vadd.f32 %v1024, %v1137
        %v1139 = vpop.f32.mrb[0].mxu0
        %1140 = vmatprep.mubr.f32.mxu0 0.0
        %1141 = vmatmul.mubr.f32.gmra.mrb[0].mxu0 %v1043
        %v1142 = vpop.f32.mrb[0].mxu0
        %v1143 = vadd.f32 %v1024, %v1142
        %v1144 = vpop.f32.mrb[0].mxu0
        %1145 = vmatprep.mubr.f32.mxu0 0.0
        %1146 = vmatmul.mubr.f32.gmra.mrb[0].mxu0 %v1046
        %v1147 = vpop.f32.mrb[0].mxu0
        %v1148 = vadd.f32 %v1024, %v1147
        %v1149 = vpop.f32.mrb[0].mxu0
        %1150 = vmatprep.mubr.f32.mxu0 0.0
        %1151 = vmatmul.mubr.f32.gmra.mrb[0].mxu0 %v1049
        %v1152 = vpop.f32.mrb[0].mxu0
        %v1153 = vadd.f32 %v1024, %v1152
        %v1154 = vpop.f32.mrb[0].mxu0
        %1155 = vdwg.mxu0
        %v1156 = vmul.f32 %v1118, %v1005
        %v1157 = vmul.f32 %v1123, %v1005
        %v1158 = vmul.f32 %v1128, %v1005
        %v1159 = vmul.f32 %v1133, %v1005
        %v1160 = vmul.f32 %v1138, %v1005
        %v1161 = vmul.f32 %v1143, %v1005
        %v1162 = vmul.f32 %v1148, %v1005
        %v1163 = vmul.f32 %v1153, %v1005
        %v1165 = vcombine.high %v1004, %v1004
        %v1167 = vunpack.c.l.s4 1966171168
        %v1168 = vunpack.c.0.s8 %v1167
        %v1169 = vlaneseq
        %v1170 = vshrl.u32 %v1169, 7
        %v1171 = vsub.s32 %v1168, %v1170
        %v1172 = vrot.slane %v1004, %v1171
        %v1174 = vunpack.c.l.s4 1966171168
        %v1175 = vunpack.c.0.s8 %v1174
        %v1176 = vlaneseq
        %v1177 = vshrl.u32 %v1176, 7
        %v1178 = vsub.s32 %v1175, %v1177
        %v1179 = vrot.slane %v1165, %v1178
        %v1180 = vcombine.high %v1172, %v1172
        %v1181 = vcombine.high %v1179, %v1179
        %v1183 = vunpack.c.l.s4 1966171168
        %v1184 = vunpack.c.0.s8 %v1183
        %v1185 = vlaneseq
        %v1186 = vshrl.u32 %v1185, 7
        %v1187 = vsub.s32 %v1184, %v1186
        %v1188 = vrot.slane %v1172, %v1187
        %v1190 = vunpack.c.l.s4 1966171168
        %v1191 = vunpack.c.0.s8 %v1190
        %v1192 = vlaneseq
        %v1193 = vshrl.u32 %v1192, 7
        %v1194 = vsub.s32 %v1191, %v1193
        %v1195 = vrot.slane %v1179, %v1194
        %v1197 = vunpack.c.l.s4 1966171168
        %v1198 = vunpack.c.0.s8 %v1197
        %v1199 = vlaneseq
        %v1200 = vshrl.u32 %v1199, 7
        %v1201 = vsub.s32 %v1198, %v1200
        %v1202 = vrot.slane %v1180, %v1201
        %v1204 = vunpack.c.l.s4 1966171168
        %v1205 = vunpack.c.0.s8 %v1204
        %v1206 = vlaneseq
        %v1207 = vshrl.u32 %v1206, 7
        %v1208 = vsub.s32 %v1205, %v1207
        %v1209 = vrot.slane %v1181, %v1208
        %v1210 = vcombine.high %v1188, %v1188
        %v1211 = vcombine.high %v1195, %v1195
        %v1212 = vcombine.high %v1202, %v1202
        %v1213 = vcombine.high %v1209, %v1209
        %v1214 = vlaneseq
        %v1215 = vshrl.u32 %v1214, 7
        %v1216 = vsub.s32 0, %v1215
        %v1217 = vrot.slane %v1188, %v1216
        %v1218 = vlaneseq
        %v1219 = vshrl.u32 %v1218, 7
        %v1220 = vsub.s32 0, %v1219
        %v1221 = vrot.slane %v1202, %v1220
        %v1222 = vlaneseq
        %v1223 = vshrl.u32 %v1222, 7
        %v1224 = vsub.s32 0, %v1223
        %v1225 = vrot.slane %v1210, %v1224
        %v1226 = vlaneseq
        %v1227 = vshrl.u32 %v1226, 7
        %v1228 = vsub.s32 0, %v1227
        %v1229 = vrot.slane %v1212, %v1228
        %v1230 = vlaneseq
        %v1231 = vshrl.u32 %v1230, 7
        %v1232 = vsub.s32 0, %v1231
        %v1233 = vrot.slane %v1195, %v1232
        %v1234 = vlaneseq
        %v1235 = vshrl.u32 %v1234, 7
        %v1236 = vsub.s32 0, %v1235
        %v1237 = vrot.slane %v1209, %v1236
        %v1238 = vlaneseq
        %v1239 = vshrl.u32 %v1238, 7
        %v1240 = vsub.s32 0, %v1239
        %v1241 = vrot.slane %v1211, %v1240
        %v1242 = vlaneseq
        %v1243 = vshrl.u32 %v1242, 7
        %v1244 = vsub.s32 0, %v1243
        %v1245 = vrot.slane %v1213, %v1244
        %v1254 = vmul.f32 %v1156, %v1217
        %v1255 = vmul.f32 %v1157, %v1221
        %v1256 = vmul.f32 %v1158, %v1225
        %v1257 = vmul.f32 %v1159, %v1229
        %v1258 = vmul.f32 %v1160, %v1233
        %v1259 = vmul.f32 %v1161, %v1237
        %v1260 = vmul.f32 %v1162, %v1241
        %v1261 = vmul.f32 %v1163, %v1245
        %v1262 = vld [vmem:[#allocation15] sm:$0xff]
        %v1263 = vld [vmem:[#allocation15 + $0x8] sm:$0xff]
        %v1264 = vld [vmem:[#allocation15 + $0x10] sm:$0xff]
        %v1265 = vld [vmem:[#allocation15 + $0x18] sm:$0xff]
        %v1267 = vsel %vm1026, %v1254, 0
        %v1270 = vsel %vm1026, %v1255, 0
        %v1273 = vsel %vm1026, %v1256, 0
        %v1276 = vsel %vm1026, %v1257, 0
        %v1279 = vsel %vm1026, %v1258, 0
        %v1282 = vsel %vm1026, %v1259, 0
        %v1285 = vsel %vm1026, %v1260, 0
        %v1288 = vsel %vm1026, %v1261, 0
        %1290 = vmatprep.subr.mxu0 0.0
        %1291 = vmatpush1.msra.mxu0 %v1262
        %1292 = vmatprep.subr.mxu0 0.0
        %1293 = vmatpush1.msra.mxu0 %v1263
        %1294 = vmatprep.subr.mxu0 0.0
        %1295 = vmatpush1.msra.mxu0 %v1264
        %1296 = vmatprep.subr.mxu0 0.0
        %1297 = vmatpush1.msra.mxu0 %v1265
        %1298 = vmatprep.subr.mxu0 0.0
        %1299 = vmatpush1.msra.mxu0 0.0
        %1300 = vmatprep.subr.mxu0 0.0
        %1301 = vmatpush1.msra.mxu0 0.0
        %1302 = vmatprep.subr.mxu0 0.0
        %1303 = vmatpush1.msra.mxu0 0.0
        %1304 = vmatprep.subr.mxu0 0.0
        %1305 = vmatpush1.msra.mxu0 0.0
        %1306 = vmatprep.subr.mxu0 0.0
        %1307 = vmatpush1.msra.mxu0 0.0
        %1308 = vmatprep.subr.mxu0 0.0
        %1309 = vmatpush1.msra.mxu0 0.0
        %1310 = vmatprep.subr.mxu0 0.0
        %1311 = vmatpush1.msra.mxu0 0.0
        %1312 = vmatprep.subr.mxu0 0.0
        %1313 = vmatpush1.msra.mxu0 0.0
        %1314 = vmatprep.subr.mxu0 0.0
        %1315 = vmatpush1.msra.mxu0 0.0
        %1316 = vmatprep.subr.mxu0 0.0
        %1317 = vmatpush1.msra.mxu0 0.0
        %1318 = vmatprep.subr.mxu0 0.0
        %1319 = vmatpush1.msra.mxu0 0.0
        %1320 = vmatprep.subr.mxu0 0.0
        %1321 = vmatpush1.msra.mxu0 0.0
        %1322 = vmatprep.subr.mxu0 0.0
        %1323 = vmatpush1.msra.mxu0 0.0
        %1324 = vmatprep.subr.mxu0 0.0
        %1325 = vmatpush1.msra.mxu0 0.0
        %1326 = vmatprep.subr.mxu0 0.0
        %1327 = vmatpush1.msra.mxu0 0.0
        %1328 = vmatprep.subr.mxu0 0.0
        %1329 = vmatpush1.msra.mxu0 0.0
        %1330 = vmatprep.subr.mxu0 0.0
        %1331 = vmatpush1.msra.mxu0 0.0
        %1332 = vmatprep.subr.mxu0 0.0
        %1333 = vmatpush1.msra.mxu0 0.0
        %1334 = vmatprep.subr.mxu0 0.0
        %1335 = vmatpush1.msra.mxu0 0.0
        %1336 = vmatprep.subr.mxu0 0.0
        %1337 = vmatpush1.msra.mxu0 0.0
        %1338 = vmatprep.subr.mxu0 0.0
        %1339 = vmatpush1.msra.mxu0 0.0
        %1340 = vmatprep.subr.mxu0 0.0
        %1341 = vmatpush1.msra.mxu0 0.0
        %1342 = vmatprep.subr.mxu0 0.0
        %1343 = vmatpush1.msra.mxu0 0.0
        %1344 = vmatprep.subr.mxu0 0.0
        %1345 = vmatpush1.msra.mxu0 0.0
        %1346 = vmatprep.subr.mxu0 0.0
        %1347 = vmatpush1.msra.mxu0 0.0
        %1348 = vmatprep.subr.mxu0 0.0
        %1349 = vmatpush1.msra.mxu0 0.0
        %1350 = vmatprep.subr.mxu0 0.0
        %1351 = vmatpush1.msra.mxu0 0.0
        %1352 = vmatprep.subr.mxu0 0.0
        %1353 = vmatpush1.msra.mxu0 0.0
        %1354 = vmatprep.mubr.f32.mxu0 0.0
        %1355 = vmatmul.mubr.f32.gmra.mrb[0].mxu0 %v1267
        %v1356 = vpop.f32.mrb[0].mxu0
        %v1357 = vadd.f32 0.0, %v1356
        %v1358 = vpop.f32.mrb[0].mxu0
        %1359 = vmatprep.mubr.f32.mxu0 0.0
        %1360 = vmatmul.mubr.f32.gmra.mrb[0].mxu0 %v1270
        %v1361 = vpop.f32.mrb[0].mxu0
        %v1362 = vadd.f32 0.0, %v1361
        %v1363 = vpop.f32.mrb[0].mxu0
        %1364 = vmatprep.mubr.f32.mxu0 0.0
        %1365 = vmatmul.mubr.f32.gmra.mrb[0].mxu0 %v1273
        %v1366 = vpop.f32.mrb[0].mxu0
        %v1367 = vadd.f32 0.0, %v1366
        %v1368 = vpop.f32.mrb[0].mxu0
        %1369 = vmatprep.mubr.f32.mxu0 0.0
        %1370 = vmatmul.mubr.f32.gmra.mrb[0].mxu0 %v1276
        %v1371 = vpop.f32.mrb[0].mxu0
        %v1372 = vadd.f32 0.0, %v1371
        %v1373 = vpop.f32.mrb[0].mxu0
        %1374 = vmatprep.mubr.f32.mxu0 0.0
        %1375 = vmatmul.mubr.f32.gmra.mrb[0].mxu0 %v1279
        %v1376 = vpop.f32.mrb[0].mxu0
        %v1377 = vadd.f32 0.0, %v1376
        %v1378 = vpop.f32.mrb[0].mxu0
        %1379 = vmatprep.mubr.f32.mxu0 0.0
        %1380 = vmatmul.mubr.f32.gmra.mrb[0].mxu0 %v1282
        %v1381 = vpop.f32.mrb[0].mxu0
        %v1382 = vadd.f32 0.0, %v1381
        %v1383 = vpop.f32.mrb[0].mxu0
        %1384 = vmatprep.mubr.f32.mxu0 0.0
        %1385 = vmatmul.mubr.f32.gmra.mrb[0].mxu0 %v1285
        %v1386 = vpop.f32.mrb[0].mxu0
        %v1387 = vadd.f32 0.0, %v1386
        %v1388 = vpop.f32.mrb[0].mxu0
        %1389 = vmatprep.mubr.f32.mxu0 0.0
        %1390 = vmatmul.mubr.f32.gmra.mrb[0].mxu0 %v1288
        %v1391 = vpop.f32.mrb[0].mxu0
        %v1392 = vadd.f32 0.0, %v1391
        %v1393 = vpop.f32.mrb[0].mxu0
        %1394 = vdwg.mxu0
        %v1395 = vmul.f32 %v1357, 1.442695
        %v1396 = vpow.pop %v1395
        %v1397 = vmul.f32 %v1362, 1.442695
        %v1398 = vpow.pop %v1397
        %v1399 = vmul.f32 %v1367, 1.442695
        %v1400 = vpow.pop %v1399
        %v1401 = vmul.f32 %v1372, 1.442695
        %v1402 = vpow.pop %v1401
        %v1403 = vmul.f32 %v1377, 1.442695
        %v1404 = vpow.pop %v1403
        %v1405 = vmul.f32 %v1382, 1.442695
        %v1406 = vpow.pop %v1405
        %v1407 = vmul.f32 %v1387, 1.442695
        %v1408 = vpow.pop %v1407
        %v1409 = vmul.f32 %v1392, 1.442695
        %v1410 = vpow.pop %v1409
        %v1411 = vld [vmem:[%s863] sm:$0xff]
        %v1412 = vld [vmem:[%s863 + $0x8] sm:$0xff]
        %v1413 = vld [vmem:[%s863 + $0x10] sm:$0xff]
        %v1414 = vld [vmem:[%s863 + $0x18] sm:$0xff]
        %v1415 = vld [vmem:[%s863 + $0x20] sm:$0xff]
        %v1416 = vld [vmem:[%s863 + $0x28] sm:$0xff]
        %v1417 = vld [vmem:[%s863 + $0x30] sm:$0xff]
        %v1418 = vld [vmem:[%s863 + $0x38] sm:$0xff]
        %1420 = vset.pattern.permute.xlu0 0
        %1421 = vperm.xlu0 %1420, %v1411
        %v1422 = vpop.permute.xlu0 %1421
        %1425 = vset.pattern.permute.xlu0 0
        %1426 = vperm.xlu0 %1425, %v1412
        %v1427 = vpop.permute.xlu0 %1426
        %1430 = vset.pattern.permute.xlu0 0
        %1431 = vperm.xlu0 %1430, %v1413
        %v1432 = vpop.permute.xlu0 %1431
        %1435 = vset.pattern.permute.xlu0 0
        %1436 = vperm.xlu0 %1435, %v1414
        %v1437 = vpop.permute.xlu0 %1436
        %1440 = vset.pattern.permute.xlu0 0
        %1441 = vperm.xlu0 %1440, %v1415
        %v1442 = vpop.permute.xlu0 %1441
        %1445 = vset.pattern.permute.xlu0 0
        %1446 = vperm.xlu0 %1445, %v1416
        %v1447 = vpop.permute.xlu0 %1446
        %1450 = vset.pattern.permute.xlu0 0
        %1451 = vperm.xlu0 %1450, %v1417
        %v1452 = vpop.permute.xlu0 %1451
        %1455 = vset.pattern.permute.xlu0 0
        %1456 = vperm.xlu0 %1455, %v1418
        %v1457 = vpop.permute.xlu0 %1456
        %v1459 = vmul.f32 %v1396, %v1422
        %v1460 = vmul.f32 %v1398, %v1427
        %v1461 = vmul.f32 %v1400, %v1432
        %v1462 = vmul.f32 %v1402, %v1437
        %v1463 = vmul.f32 %v1404, %v1442
        %v1464 = vmul.f32 %v1406, %v1447
        %v1465 = vmul.f32 %v1408, %v1452
        %v1466 = vmul.f32 %v1410, %v1457
        %v1467 = vld [vmem:[#allocation2] sm:$0xff]
        %v1468 = vmul.f32 %v1459, %v1006
        %v1469 = vmul.f32 %v1460, %v1006
        %v1470 = vmul.f32 %v1461, %v1006
        %v1471 = vmul.f32 %v1462, %v1006
        %v1472 = vmul.f32 %v1463, %v1006
        %v1473 = vmul.f32 %v1464, %v1006
        %v1474 = vmul.f32 %v1465, %v1006
        %v1475 = vmul.f32 %v1466, %v1006
        %v1476 = vsel %vm1026, %v1468, 0.0
        %v1477 = vrot.slane %v1476, 4
        %v1478 = vadd.f32 %v1476, %v1477
        %v1479 = vrot.slane %v1478, 2
        %v1480 = vadd.f32 %v1478, %v1479
        %v1481 = vrot.slane %v1480, 1
        %v1482 = vadd.f32 %v1480, %v1481
        %v1483 = vsel %vm1026, %v1469, 0.0
        %v1484 = vrot.slane %v1483, 4
        %v1485 = vadd.f32 %v1483, %v1484
        %v1486 = vrot.slane %v1485, 2
        %v1487 = vadd.f32 %v1485, %v1486
        %v1488 = vrot.slane %v1487, 1
        %v1489 = vadd.f32 %v1487, %v1488
        %v1490 = vsel %vm1026, %v1470, 0.0
        %v1491 = vrot.slane %v1490, 4
        %v1492 = vadd.f32 %v1490, %v1491
        %v1493 = vrot.slane %v1492, 2
        %v1494 = vadd.f32 %v1492, %v1493
        %v1495 = vrot.slane %v1494, 1
        %v1496 = vadd.f32 %v1494, %v1495
        %v1497 = vsel %vm1026, %v1471, 0.0
        %v1498 = vrot.slane %v1497, 4
        %v1499 = vadd.f32 %v1497, %v1498
        %v1500 = vrot.slane %v1499, 2
        %v1501 = vadd.f32 %v1499, %v1500
        %v1502 = vrot.slane %v1501, 1
        %v1503 = vadd.f32 %v1501, %v1502
        %v1504 = vsel %vm1026, %v1472, 0.0
        %v1505 = vrot.slane %v1504, 4
        %v1506 = vadd.f32 %v1504, %v1505
        %v1507 = vrot.slane %v1506, 2
        %v1508 = vadd.f32 %v1506, %v1507
        %v1509 = vrot.slane %v1508, 1
        %v1510 = vadd.f32 %v1508, %v1509
        %v1511 = vsel %vm1026, %v1473, 0.0
        %v1512 = vrot.slane %v1511, 4
        %v1513 = vadd.f32 %v1511, %v1512
        %v1514 = vrot.slane %v1513, 2
        %v1515 = vadd.f32 %v1513, %v1514
        %v1516 = vrot.slane %v1515, 1
        %v1517 = vadd.f32 %v1515, %v1516
        %v1518 = vsel %vm1026, %v1474, 0.0
        %v1519 = vrot.slane %v1518, 4
        %v1520 = vadd.f32 %v1518, %v1519
        %v1521 = vrot.slane %v1520, 2
        %v1522 = vadd.f32 %v1520, %v1521
        %v1523 = vrot.slane %v1522, 1
        %v1524 = vadd.f32 %v1522, %v1523
        %v1525 = vsel %vm1026, %v1475, 0.0
        %v1526 = vrot.slane %v1525, 4
        %v1527 = vadd.f32 %v1525, %v1526
        %v1528 = vrot.slane %v1527, 2
        %v1529 = vadd.f32 %v1527, %v1528
        %v1530 = vrot.slane %v1529, 1
        %v1531 = vadd.f32 %v1529, %v1530
        %vm1540 = vcmask 1041409
        %v1541 = vsel %vm1540, %v1489, %v1482
        %vm1542 = vcmask 1042434
        %v1543 = vsel %vm1542, %v1496, %v1541
        %vm1544 = vcmask 1043459
        %v1545 = vsel %vm1544, %v1503, %v1543
        %vm1546 = vcmask 1044484
        %v1547 = vsel %vm1546, %v1510, %v1545
        %vm1548 = vcmask 1045509
        %v1549 = vsel %vm1548, %v1517, %v1547
        %vm1550 = vcmask 1046534
        %v1551 = vsel %vm1550, %v1524, %v1549
        %vm1552 = vcmask 1047559
        %v1553 = vsel %vm1552, %v1531, %v1551
        %v1555 = vadd.f32 %v1467, %v1553
        %1556 = vst.msk [vmem:[#allocation2] sm:$0xff] %vm1026, %v1555
        %v1557 = vld [vmem:[#allocation3] sm:$0xff]
        %v1558 = vsel %vm1026, %v1459, 0.0
        %v1559 = vrot.slane %v1558, 4
        %v1560 = vadd.f32 %v1558, %v1559
        %v1561 = vrot.slane %v1560, 2
        %v1562 = vadd.f32 %v1560, %v1561
        %v1563 = vrot.slane %v1562, 1
        %v1564 = vadd.f32 %v1562, %v1563
        %v1565 = vsel %vm1026, %v1460, 0.0
        %v1566 = vrot.slane %v1565, 4
        %v1567 = vadd.f32 %v1565, %v1566
        %v1568 = vrot.slane %v1567, 2
        %v1569 = vadd.f32 %v1567, %v1568
        %v1570 = vrot.slane %v1569, 1
        %v1571 = vadd.f32 %v1569, %v1570
        %v1572 = vsel %vm1026, %v1461, 0.0
        %v1573 = vrot.slane %v1572, 4
        %v1574 = vadd.f32 %v1572, %v1573
        %v1575 = vrot.slane %v1574, 2
        %v1576 = vadd.f32 %v1574, %v1575
        %v1577 = vrot.slane %v1576, 1
        %v1578 = vadd.f32 %v1576, %v1577
        %v1579 = vsel %vm1026, %v1462, 0.0
        %v1580 = vrot.slane %v1579, 4
        %v1581 = vadd.f32 %v1579, %v1580
        %v1582 = vrot.slane %v1581, 2
        %v1583 = vadd.f32 %v1581, %v1582
        %v1584 = vrot.slane %v1583, 1
        %v1585 = vadd.f32 %v1583, %v1584
        %v1586 = vsel %vm1026, %v1463, 0.0
        %v1587 = vrot.slane %v1586, 4
        %v1588 = vadd.f32 %v1586, %v1587
        %v1589 = vrot.slane %v1588, 2
        %v1590 = vadd.f32 %v1588, %v1589
        %v1591 = vrot.slane %v1590, 1
        %v1592 = vadd.f32 %v1590, %v1591
        %v1593 = vsel %vm1026, %v1464, 0.0
        %v1594 = vrot.slane %v1593, 4
        %v1595 = vadd.f32 %v1593, %v1594
        %v1596 = vrot.slane %v1595, 2
        %v1597 = vadd.f32 %v1595, %v1596
        %v1598 = vrot.slane %v1597, 1
        %v1599 = vadd.f32 %v1597, %v1598
        %v1600 = vsel %vm1026, %v1465, 0.0
        %v1601 = vrot.slane %v1600, 4
        %v1602 = vadd.f32 %v1600, %v1601
        %v1603 = vrot.slane %v1602, 2
        %v1604 = vadd.f32 %v1602, %v1603
        %v1605 = vrot.slane %v1604, 1
        %v1606 = vadd.f32 %v1604, %v1605
        %v1607 = vsel %vm1026, %v1466, 0.0
        %v1608 = vrot.slane %v1607, 4
        %v1609 = vadd.f32 %v1607, %v1608
        %v1610 = vrot.slane %v1609, 2
        %v1611 = vadd.f32 %v1609, %v1610
        %v1612 = vrot.slane %v1611, 1
        %v1613 = vadd.f32 %v1611, %v1612
        %v1622 = vsel %vm1540, %v1571, %v1564
        %v1623 = vsel %vm1542, %v1578, %v1622
        %v1624 = vsel %vm1544, %v1585, %v1623
        %v1625 = vsel %vm1546, %v1592, %v1624
        %v1626 = vsel %vm1548, %v1599, %v1625
        %v1627 = vsel %vm1550, %v1606, %v1626
        %v1628 = vsel %vm1552, %v1613, %v1627
        %v1630 = vadd.f32 %v1557, %v1628
        %1631 = vst.msk [vmem:[#allocation3] sm:$0xff] %vm1026, %v1630
        %p1632 = scmp.eq.s32.totalorder %s56, 1
        // Predicated region
        $region177: #{tpu_custom_call.1} parent=95 // pred_check
          %p1633 = pneg %p1632
        $region178: #{tpu_custom_call.1} parent=95 // pred_check_branch
          %1635 = sbr.rel (%p1633) target = $region180
        $region179: #{tpu_custom_call.1} parent=95 // pred_region
          %v1636 = vld [vmem:[#allocation2] sm:$0xff]
          %v1637 = vld [vmem:[#allocation3] sm:$0xff]
          %v1638 = vadd.f32 %v1637, 1e-09
          %v1639 = vrcp.pop %v1638
          %v1640 = vmul.f32 %v1636, %v1639
          %v1641 = vld [vmem:[#allocation19] sm:$0xff]
          %v1642 = vld [vmem:[#allocation19 + $0x8] sm:$0xff]
          %v1643 = vld [vmem:[#allocation19 + $0x10] sm:$0xff]
          %v1644 = vld [vmem:[#allocation19 + $0x18] sm:$0xff]
          %v1645 = vld [vmem:[#allocation21] sm:$0x1]
          %v1647 = vlaneseq
          %v1648 = vshrl.u32 %v1647, 7
          %v1649 = vsub.s32 0, %v1648
          %v1650 = vrot.slane %v1645, %v1649
          %v1653 = vsel %vm1026, %v1640, 0
          %1655 = vmatprep.subr.mxu0 0.0
          %1656 = vmatpush1.msra.mxu0 %v1641
          %1657 = vmatprep.subr.mxu0 0.0
          %1658 = vmatpush1.msra.mxu0 %v1642
          %1659 = vmatprep.subr.mxu0 0.0
          %1660 = vmatpush1.msra.mxu0 %v1643
          %1661 = vmatprep.subr.mxu0 0.0
          %1662 = vmatpush1.msra.mxu0 %v1644
          %1663 = vmatprep.subr.mxu0 0.0
          %1664 = vmatpush1.msra.mxu0 0.0
          %1665 = vmatprep.subr.mxu0 0.0
          %1666 = vmatpush1.msra.mxu0 0.0
          %1667 = vmatprep.subr.mxu0 0.0
          %1668 = vmatpush1.msra.mxu0 0.0
          %1669 = vmatprep.subr.mxu0 0.0
          %1670 = vmatpush1.msra.mxu0 0.0
          %1671 = vmatprep.subr.mxu0 0.0
          %1672 = vmatpush1.msra.mxu0 0.0
          %1673 = vmatprep.subr.mxu0 0.0
          %1674 = vmatpush1.msra.mxu0 0.0
          %1675 = vmatprep.subr.mxu0 0.0
          %1676 = vmatpush1.msra.mxu0 0.0
          %1677 = vmatprep.subr.mxu0 0.0
          %1678 = vmatpush1.msra.mxu0 0.0
          %1679 = vmatprep.subr.mxu0 0.0
          %1680 = vmatpush1.msra.mxu0 0.0
          %1681 = vmatprep.subr.mxu0 0.0
          %1682 = vmatpush1.msra.mxu0 0.0
          %1683 = vmatprep.subr.mxu0 0.0
          %1684 = vmatpush1.msra.mxu0 0.0
          %1685 = vmatprep.subr.mxu0 0.0
          %1686 = vmatpush1.msra.mxu0 0.0
          %1687 = vmatprep.subr.mxu0 0.0
          %1688 = vmatpush1.msra.mxu0 0.0
          %1689 = vmatprep.subr.mxu0 0.0
          %1690 = vmatpush1.msra.mxu0 0.0
          %1691 = vmatprep.subr.mxu0 0.0
          %1692 = vmatpush1.msra.mxu0 0.0
          %1693 = vmatprep.subr.mxu0 0.0
          %1694 = vmatpush1.msra.mxu0 0.0
          %1695 = vmatprep.subr.mxu0 0.0
          %1696 = vmatpush1.msra.mxu0 0.0
          %1697 = vmatprep.subr.mxu0 0.0
          %1698 = vmatpush1.msra.mxu0 0.0
          %1699 = vmatprep.subr.mxu0 0.0
          %1700 = vmatpush1.msra.mxu0 0.0
          %1701 = vmatprep.subr.mxu0 0.0
          %1702 = vmatpush1.msra.mxu0 0.0
          %1703 = vmatprep.subr.mxu0 0.0
          %1704 = vmatpush1.msra.mxu0 0.0
          %1705 = vmatprep.subr.mxu0 0.0
          %1706 = vmatpush1.msra.mxu0 0.0
          %1707 = vmatprep.subr.mxu0 0.0
          %1708 = vmatpush1.msra.mxu0 0.0
          %1709 = vmatprep.subr.mxu0 0.0
          %1710 = vmatpush1.msra.mxu0 0.0
          %1711 = vmatprep.subr.mxu0 0.0
          %1712 = vmatpush1.msra.mxu0 0.0
          %1713 = vmatprep.subr.mxu0 0.0
          %1714 = vmatpush1.msra.mxu0 0.0
          %1715 = vmatprep.subr.mxu0 0.0
          %1716 = vmatpush1.msra.mxu0 0.0
          %1717 = vmatprep.subr.mxu0 0.0
          %1718 = vmatpush1.msra.mxu0 0.0
          %1719 = vmatprep.mubr.f32.mxu0 0.0
          %1720 = vmatmul.mubr.f32.gmra.mrb[0].mxu0 %v1653
          %v1721 = vpop.f32.mrb[0].mxu0
          %v1722 = vadd.f32 %v1650, %v1721
          %v1723 = vpop.f32.mrb[0].mxu0
          %1724 = vdwg.mxu0
          %v1725 = vld [vmem:[%s818] sm:$0xff]
          %v1726 = vadd.f32 %v1722, %v1725
          %v1727 = vsel %vm1026, %v1726, 0.0
          %1728 = vadd.xlane.f32.xlu0 %v1727
          %v1729 = vpop.xlane.xlu0 %1728
          %v1730 = vrcp.pop 32.0
          %v1731 = vmul.f32 %v1729, %v1730
          %v1732 = vsub.f32 %v1726, %v1731
          %v1733 = vmul.f32 %v1732, %v1732
          %v1734 = vsel %vm1026, %v1733, 0.0
          %1735 = vadd.xlane.f32.xlu0 %v1734
          %v1736 = vpop.xlane.xlu0 %1735
          %v1737 = vmul.f32 %v1736, 0.032258064
          %v1738 = vrsqrt.pop %v1737
          %v1739 = vmul.f32 %v1737, %v1738
          %vm1740 = vcmp.eq.f32.partialorder %v1737, inf
          %v1741 = vsel %vm1740, %v1737, %v1739
          %vm1742 = vcmp.eq.f32.partialorder %v1737, 0.0
          %v1743 = vand.u32 %v1737, 2147483648
          %v1744 = vsel %vm1742, %v1743, %v1741
          %v1745 = vadd.f32 %v1744, 1e-09
          %v1746 = vrcp.pop %v1745
          %v1747 = vld [vmem:[#allocation28] sm:$0x1]
          %v1748 = vmul.f32 %v1732, %v1746
          %v1750 = vlaneseq
          %v1751 = vshrl.u32 %v1750, 7
          %v1752 = vsub.s32 0, %v1751
          %v1753 = vrot.slane %v1747, %v1752
          %v1755 = vmul.f32 %v1753, %v1748
          %v1756 = vld [vmem:[#allocation30] sm:$0x1]
          %v1758 = vlaneseq
          %v1759 = vshrl.u32 %v1758, 7
          %v1760 = vsub.s32 0, %v1759
          %v1761 = vrot.slane %v1756, %v1760
          %v1763 = vadd.f32 %v1755, %v1761
          %v1764 = vld [vmem:[#allocation22] sm:$0xff]
          %v1765 = vld [vmem:[#allocation22 + $0x8] sm:$0xff]
          %v1766 = vld [vmem:[#allocation22 + $0x10] sm:$0xff]
          %v1767 = vld [vmem:[#allocation22 + $0x18] sm:$0xff]
          %v1768 = vld [vmem:[#allocation24] sm:$0x1]
          %v1770 = vlaneseq
          %v1771 = vshrl.u32 %v1770, 7
          %v1772 = vsub.s32 0, %v1771
          %v1773 = vrot.slane %v1768, %v1772
          %v1776 = vsel %vm1026, %v1763, 0
          %1778 = vmatprep.subr.mxu0 0.0
          %1779 = vmatpush1.msra.mxu0 %v1764
          %1780 = vmatprep.subr.mxu0 0.0
          %1781 = vmatpush1.msra.mxu0 %v1765
          %1782 = vmatprep.subr.mxu0 0.0
          %1783 = vmatpush1.msra.mxu0 %v1766
          %1784 = vmatprep.subr.mxu0 0.0
          %1785 = vmatpush1.msra.mxu0 %v1767
          %1786 = vmatprep.subr.mxu0 0.0
          %1787 = vmatpush1.msra.mxu0 0.0
          %1788 = vmatprep.subr.mxu0 0.0
          %1789 = vmatpush1.msra.mxu0 0.0
          %1790 = vmatprep.subr.mxu0 0.0
          %1791 = vmatpush1.msra.mxu0 0.0
          %1792 = vmatprep.subr.mxu0 0.0
          %1793 = vmatpush1.msra.mxu0 0.0
          %1794 = vmatprep.subr.mxu0 0.0
          %1795 = vmatpush1.msra.mxu0 0.0
          %1796 = vmatprep.subr.mxu0 0.0
          %1797 = vmatpush1.msra.mxu0 0.0
          %1798 = vmatprep.subr.mxu0 0.0
          %1799 = vmatpush1.msra.mxu0 0.0
          %1800 = vmatprep.subr.mxu0 0.0
          %1801 = vmatpush1.msra.mxu0 0.0
          %1802 = vmatprep.subr.mxu0 0.0
          %1803 = vmatpush1.msra.mxu0 0.0
          %1804 = vmatprep.subr.mxu0 0.0
          %1805 = vmatpush1.msra.mxu0 0.0
          %1806 = vmatprep.subr.mxu0 0.0
          %1807 = vmatpush1.msra.mxu0 0.0
          %1808 = vmatprep.subr.mxu0 0.0
          %1809 = vmatpush1.msra.mxu0 0.0
          %1810 = vmatprep.subr.mxu0 0.0
          %1811 = vmatpush1.msra.mxu0 0.0
          %1812 = vmatprep.subr.mxu0 0.0
          %1813 = vmatpush1.msra.mxu0 0.0
          %1814 = vmatprep.subr.mxu0 0.0
          %1815 = vmatpush1.msra.mxu0 0.0
          %1816 = vmatprep.subr.mxu0 0.0
          %1817 = vmatpush1.msra.mxu0 0.0
          %1818 = vmatprep.subr.mxu0 0.0
          %1819 = vmatpush1.msra.mxu0 0.0
          %1820 = vmatprep.subr.mxu0 0.0
          %1821 = vmatpush1.msra.mxu0 0.0
          %1822 = vmatprep.subr.mxu0 0.0
          %1823 = vmatpush1.msra.mxu0 0.0
          %1824 = vmatprep.subr.mxu0 0.0
          %1825 = vmatpush1.msra.mxu0 0.0
          %1826 = vmatprep.subr.mxu0 0.0
          %1827 = vmatpush1.msra.mxu0 0.0
          %1828 = vmatprep.subr.mxu0 0.0
          %1829 = vmatpush1.msra.mxu0 0.0
          %1830 = vmatprep.subr.mxu0 0.0
          %1831 = vmatpush1.msra.mxu0 0.0
          %1832 = vmatprep.subr.mxu0 0.0
          %1833 = vmatpush1.msra.mxu0 0.0
          %1834 = vmatprep.subr.mxu0 0.0
          %1835 = vmatpush1.msra.mxu0 0.0
          %1836 = vmatprep.subr.mxu0 0.0
          %1837 = vmatpush1.msra.mxu0 0.0
          %1838 = vmatprep.subr.mxu0 0.0
          %1839 = vmatpush1.msra.mxu0 0.0
          %1840 = vmatprep.subr.mxu0 0.0
          %1841 = vmatpush1.msra.mxu0 0.0
          %1842 = vmatprep.mubr.f32.mxu0 0.0
          %1843 = vmatmul.mubr.f32.gmra.mrb[0].mxu0 %v1776
          %v1844 = vpop.f32.mrb[0].mxu0
          %v1845 = vadd.f32 %v1773, %v1844
          %v1846 = vpop.f32.mrb[0].mxu0
          %1847 = vdwg.mxu0
          %v1848 = vld [vmem:[#allocation25] sm:$0xff]
          %v1849 = vld [vmem:[#allocation25 + $0x8] sm:$0xff]
          %v1850 = vld [vmem:[#allocation25 + $0x10] sm:$0xff]
          %v1851 = vld [vmem:[#allocation25 + $0x18] sm:$0xff]
          %v1852 = vld [vmem:[#allocation27] sm:$0x1]
          %v1854 = vlaneseq
          %v1855 = vshrl.u32 %v1854, 7
          %v1856 = vsub.s32 0, %v1855
          %v1857 = vrot.slane %v1852, %v1856
          %v1860 = vsel %vm1026, %v1845, 0
          %1862 = vmatprep.subr.mxu0 0.0
          %1863 = vmatpush1.msra.mxu0 %v1848
          %1864 = vmatprep.subr.mxu0 0.0
          %1865 = vmatpush1.msra.mxu0 %v1849
          %1866 = vmatprep.subr.mxu0 0.0
          %1867 = vmatpush1.msra.mxu0 %v1850
          %1868 = vmatprep.subr.mxu0 0.0
          %1869 = vmatpush1.msra.mxu0 %v1851
          %1870 = vmatprep.subr.mxu0 0.0
          %1871 = vmatpush1.msra.mxu0 0.0
          %1872 = vmatprep.subr.mxu0 0.0
          %1873 = vmatpush1.msra.mxu0 0.0
          %1874 = vmatprep.subr.mxu0 0.0
          %1875 = vmatpush1.msra.mxu0 0.0
          %1876 = vmatprep.subr.mxu0 0.0
          %1877 = vmatpush1.msra.mxu0 0.0
          %1878 = vmatprep.subr.mxu0 0.0
          %1879 = vmatpush1.msra.mxu0 0.0
          %1880 = vmatprep.subr.mxu0 0.0
          %1881 = vmatpush1.msra.mxu0 0.0
          %1882 = vmatprep.subr.mxu0 0.0
          %1883 = vmatpush1.msra.mxu0 0.0
          %1884 = vmatprep.subr.mxu0 0.0
          %1885 = vmatpush1.msra.mxu0 0.0
          %1886 = vmatprep.subr.mxu0 0.0
          %1887 = vmatpush1.msra.mxu0 0.0
          %1888 = vmatprep.subr.mxu0 0.0
          %1889 = vmatpush1.msra.mxu0 0.0
          %1890 = vmatprep.subr.mxu0 0.0
          %1891 = vmatpush1.msra.mxu0 0.0
          %1892 = vmatprep.subr.mxu0 0.0
          %1893 = vmatpush1.msra.mxu0 0.0
          %1894 = vmatprep.subr.mxu0 0.0
          %1895 = vmatpush1.msra.mxu0 0.0
          %1896 = vmatprep.subr.mxu0 0.0
          %1897 = vmatpush1.msra.mxu0 0.0
          %1898 = vmatprep.subr.mxu0 0.0
          %1899 = vmatpush1.msra.mxu0 0.0
          %1900 = vmatprep.subr.mxu0 0.0
          %1901 = vmatpush1.msra.mxu0 0.0
          %1902 = vmatprep.subr.mxu0 0.0
          %1903 = vmatpush1.msra.mxu0 0.0
          %1904 = vmatprep.subr.mxu0 0.0
          %1905 = vmatpush1.msra.mxu0 0.0
          %1906 = vmatprep.subr.mxu0 0.0
          %1907 = vmatpush1.msra.mxu0 0.0
          %1908 = vmatprep.subr.mxu0 0.0
          %1909 = vmatpush1.msra.mxu0 0.0
          %1910 = vmatprep.subr.mxu0 0.0
          %1911 = vmatpush1.msra.mxu0 0.0
          %1912 = vmatprep.subr.mxu0 0.0
          %1913 = vmatpush1.msra.mxu0 0.0
          %1914 = vmatprep.subr.mxu0 0.0
          %1915 = vmatpush1.msra.mxu0 0.0
          %1916 = vmatprep.subr.mxu0 0.0
          %1917 = vmatpush1.msra.mxu0 0.0
          %1918 = vmatprep.subr.mxu0 0.0
          %1919 = vmatpush1.msra.mxu0 0.0
          %1920 = vmatprep.subr.mxu0 0.0
          %1921 = vmatpush1.msra.mxu0 0.0
          %1922 = vmatprep.subr.mxu0 0.0
          %1923 = vmatpush1.msra.mxu0 0.0
          %1924 = vmatprep.subr.mxu0 0.0
          %1925 = vmatpush1.msra.mxu0 0.0
          %1926 = vmatprep.mubr.f32.mxu0 0.0
          %1927 = vmatmul.mubr.f32.gmra.mrb[0].mxu0 %v1860
          %v1928 = vpop.f32.mrb[0].mxu0
          %v1929 = vadd.f32 %v1857, %v1928
          %v1930 = vpop.f32.mrb[0].mxu0
          %1931 = vdwg.mxu0
          %v1932 = vadd.f32 %v1763, %v1929
          %v1933 = vsel %vm1026, %v1932, 0.0
          %1934 = vadd.xlane.f32.xlu0 %v1933
          %v1935 = vpop.xlane.xlu0 %1934
          %v1936 = vmul.f32 %v1935, %v1730
          %v1937 = vsub.f32 %v1932, %v1936
          %v1938 = vmul.f32 %v1937, %v1937
          %v1939 = vsel %vm1026, %v1938, 0.0
          %1940 = vadd.xlane.f32.xlu0 %v1939
          %v1941 = vpop.xlane.xlu0 %1940
          %v1942 = vmul.f32 %v1941, 0.032258064
          %v1943 = vrsqrt.pop %v1942
          %v1944 = vmul.f32 %v1942, %v1943
          %vm1945 = vcmp.eq.f32.partialorder %v1942, inf
          %v1946 = vsel %vm1945, %v1942, %v1944
          %vm1947 = vcmp.eq.f32.partialorder %v1942, 0.0
          %v1948 = vand.u32 %v1942, 2147483648
          %v1949 = vsel %vm1947, %v1948, %v1946
          %v1950 = vadd.f32 %v1949, 1e-09
          %v1951 = vrcp.pop %v1950
          %v1952 = vld [vmem:[#allocation31] sm:$0x1]
          %v1953 = vmul.f32 %v1937, %v1951
          %v1955 = vlaneseq
          %v1956 = vshrl.u32 %v1955, 7
          %v1957 = vsub.s32 0, %v1956
          %v1958 = vrot.slane %v1952, %v1957
          %v1960 = vmul.f32 %v1958, %v1953
          %v1961 = vld [vmem:[#allocation33] sm:$0x1]
          %v1963 = vlaneseq
          %v1964 = vshrl.u32 %v1963, 7
          %v1965 = vsub.s32 0, %v1964
          %v1966 = vrot.slane %v1961, %v1965
          %v1968 = vadd.f32 %v1960, %v1966
          %1969 = vst.msk [vmem:[%s994] sm:$0xff] %vm1026, %v1968
        $region180: #{tpu_custom_call.1} parent=95 // pred_fallthru
          _
        %s1970 = sand.u32 %s504, 1
        %s1971 = scalar_lea.sflag [#allocation6], %s1970
        %s1972 = sand.u32 %s504, 1
        %s1973 = smul.addr %s1972, 8
        %s1974 = scalar_lea.vmem [#allocation34], %s1973
        // Predicated region
        $region181: #{tpu_custom_call.1} parent=95 // pred_check
          %p1975 = pneg %p514
        $region182: #{tpu_custom_call.1} parent=95 // pred_check_branch
          %1977 = sbr.rel (%p1975) target = $region184
        $region183: #{tpu_custom_call.1} parent=95 // pred_region
          %s1979 = ssub.s32 128, 128
          %1980 = vsyncadd %s1971, %s1979
          %s1981 = smul.addr %s55, 128
          %s1982 = scalar_lea.hbm %s19, %s1981
          %s1984 = sshll.u32 %s1974, 4
          %s1985 = int_to_ptr.vmem [resolvable:$true] %s1984
          %1987 = dma.vmem_to_hbm [thread:$0]  %s1985, 128, %s1982, %s1971
        $region184: #{tpu_custom_call.1} parent=95 // pred_fallthru
          _
      $region96: #{tpu_custom_call.1} parent=5 // pred_fallthru
        _
      %p1988 = scmp.le.s32.totalorder 2, %s46
      // Predicated region
      $region185: #{tpu_custom_call.1} parent=5 // pred_check
        %p1989 = pneg %p1988
      $region186: #{tpu_custom_call.1} parent=5 // pred_check_branch
        %1991 = sbr.rel (%p1989) target = $region188
      $region187: #{tpu_custom_call.1} parent=5 // pred_region
        %s1992 = ssub.s32 %s46, 2
        // Predicated region
        $region189: #{tpu_custom_call.1} parent=187 // pred_check
          %p1993 = pneg %p520
        $region190: #{tpu_custom_call.1} parent=187 // pred_check_branch
          %1995 = sbr.rel (%p1993) target = $region192
        $region191: #{tpu_custom_call.1} parent=187 // pred_region
          %s1996 = sand.u32 %s505, 1
          %s1997 = scalar_lea.sflag [#allocation6], %s1996
          %s1998 = sand.u32 %s505, 1
          %s1999 = smul.addr %s1998, 8
          %s2000 = scalar_lea.vmem [#allocation34], %s1999
          %2001 = dma.done %s1997, 128
        $region192: #{tpu_custom_call.1} parent=187 // pred_fallthru
          _
      $region188: #{tpu_custom_call.1} parent=5 // pred_fallthru
        _
    $region6: #{tpu_custom_call.1} parent=1 // loop_footer
      %s50 = sadd.s32 1, %s46
    $region7: #{tpu_custom_call.1} parent=1 // loop_footer_branch
      %45 = sbr.rel target = $region3
    $region8: #{tpu_custom_call.1} parent=1 // loop_exit
      _
    %2002 = vsyncpa [#allocation5], 1
    %s2003 = scalar_lea.sflag [#allocation5], 1
    %2004 = vsyncpa %s2003, 1
    %2005 = vsyncpa [#allocation8], 1
    %s2006 = scalar_lea.sflag [#allocation8], 1
    %2007 = vsyncpa %s2006, 1
    %2008 = vsyncpa [#allocation11], 1
    %s2009 = scalar_lea.sflag [#allocation11], 1
    %2010 = vsyncpa %s2009, 1
    %2011 = vsyncpa [#allocation14], 1
    %s2012 = scalar_lea.sflag [#allocation14], 1
    %2013 = vsyncpa %s2012, 1
    %2014 = vsyncpa [#allocation17], 1
    %2015 = vsyncpa [#allocation20], 1
    %2016 = vsyncpa [#allocation23], 1
    %2017 = vsyncpa [#allocation26], 1
    %2018 = vsyncpa [#allocation29], 1
    %2019 = vsyncpa [#allocation32], 1
    %2020 = vsyncpa [#allocation6], 1
    %s2021 = scalar_lea.sflag [#allocation6], 1
    %2022 = vsyncpa %s2021, 1

</llo_original>
